<compile_context>
chip_gen: v7x
topology: tpu7x:2x2x1
jax: 0.10.0
libtpu: 0.0.40
codegen_flags: <defaults>
</compile_context>

<pallas_src>
import functools

import jax
import jax.numpy as jnp
from jax.experimental import pallas as pl
from jax.experimental.pallas import tpu as pltpu


def _layernorm(x, gamma, beta, eps=1e-5):
    mean = jnp.mean(x, axis=-1, keepdims=True)
    var = jnp.mean(jnp.square(x - mean), axis=-1, keepdims=True)
    return (x - mean) * jax.lax.rsqrt(var + eps) * gamma + beta


def _pick_batch_block(B):
    """Largest divisor of B (<=8) that still leaves >=2 grid blocks (megacore)."""
    best = 1
    for d in range(1, min(B, 8) + 1):
        if B % d == 0 and (B // d >= 2 or B == 1):
            best = d
    return best


def _ff_chunk(f4):
    """Chunk width for tiling the 4C FFN axis."""
    if f4 <= 1024:
        return f4
    for c in (1024, 512, 256, 128):
        if f4 % c == 0:
            return c
    return f4


def _vmem_limit_bytes():
    """Generation-aware VMEM limit: ~3/4 of physical, capped at 112 MiB."""
    cap = 64 * 1024 * 1024
    try:
        info = pltpu.get_tpu_info()
        cap = int(getattr(info, "vmem_capacity_bytes", cap)) or cap
    except Exception:
        pass
    return int(min(cap * 3 // 4, 112 * 1024 * 1024))


# --------------------------- fused-blocks kernel --------------------------- #

def blocks_kernel(x_ref, mask_ref, ln1g_ref, ln1b_ref, wqkv_ref, wp_ref, bp_ref,
                  ln2g_ref, ln2b_ref, w1_ref, b1_ref, w2_ref, b2_ref,
                  o_ref, res_ref, att_ref, *, num_heads, ff_chunk):
    """Grid = (B//Bb, L).  Step (b, l) applies Block `l` to Bb batch rows; the
    residual stream stays resident in VMEM (res_ref) across the layer axis."""
    l = pl.program_id(1)
    Bb, T, C = x_ref.shape
    N = Bb * T
    hs = C // num_heads
    scale = C ** (-0.5)                    # matches PyTorch: scale by embd dim

    @pl.when(l == 0)
    def _():
        res_ref[...] = x_ref[...].reshape(N, C)   # load residual stream once

    x = res_ref[...]                               # (N, C) float32
    add_mask = mask_ref[...].astype(jnp.float32)   # (T, T) additive causal mask

    # ---- multi-head self-attention (pre-LN) ----
    xn = _layernorm(x, ln1g_ref[0], ln1b_ref[0]).astype(jnp.bfloat16)
    qkv = jnp.dot(xn, wqkv_ref[0],
                  preferred_element_type=jnp.float32).astype(jnp.bfloat16)

    for b in range(Bb):                    # static unroll: Bb and heads small
        qb = qkv[b * T:(b + 1) * T, 0 * C:1 * C]
        kb = qkv[b * T:(b + 1) * T, 1 * C:2 * C]
        vb = qkv[b * T:(b + 1) * T, 2 * C:3 * C]
        for h in range(num_heads):
            q_h = qb[:, h * hs:(h + 1) * hs]
            k_h = kb[:, h * hs:(h + 1) * hs]
            v_h = vb[:, h * hs:(h + 1) * hs]
            wei = jnp.einsum('qd,kd->qk', q_h, k_h,
                             preferred_element_type=jnp.float32) * scale
            wei = wei + add_mask
            wei = wei - jnp.max(wei, axis=-1, keepdims=True)
            e = jnp.exp(wei)
            inv = pl.reciprocal(jnp.sum(e, axis=-1, keepdims=True), approx=True)
            p = (e * inv).astype(jnp.bfloat16)
            o_h = jnp.dot(p, v_h, preferred_element_type=jnp.float32)   # (T,hs)
            att_ref[b * T:(b + 1) * T, h * hs:(h + 1) * hs] = o_h.astype(jnp.bfloat16)

    # Single full-width output projection (better MXU utilisation than per-head).
    sa = jnp.dot(att_ref[...], wp_ref[0],
                 preferred_element_type=jnp.float32) + bp_ref[0]
    x1 = x + sa
    # TODO(synk): dropout omitted (eval-mode identity).

    # ---- feed-forward (pre-LN), tiled along the 4C axis ----
    xn2 = _layernorm(x1, ln2g_ref[0], ln2b_ref[0]).astype(jnp.bfloat16)
    F4 = w1_ref.shape[-1]
    ff = None
    for c0 in range(0, F4, ff_chunk):
        w1c = w1_ref[0, :, c0:c0 + ff_chunk]
        b1c = b1_ref[0, :, c0:c0 + ff_chunk]
        h1c = jnp.dot(xn2, w1c, preferred_element_type=jnp.float32) + b1c
        h1c = jnp.maximum(h1c, 0.0).astype(jnp.bfloat16)
        part = jnp.dot(h1c, w2_ref[0, c0:c0 + ff_chunk, :],
                       preferred_element_type=jnp.float32)
        ff = part if ff is None else ff + part
    x2 = x1 + ff + b2_ref[0]

    res_ref[...] = x2

    @pl.when(l == pl.num_programs(1) - 1)
    def _():
        o_ref[...] = x2.reshape(Bb, T, C).astype(o_ref.dtype)


def blocks_forward(x, stacked, num_heads):
    B, T, C = x.shape
    L = stacked[0].shape[0]
    Bb = _pick_batch_block(B)
    ff_chunk = _ff_chunk(stacked[7].shape[-1])    # w1 last dim = 4C

    # Causal additive mask, built once on host side, stored bf16, resident.
    row = jax.lax.broadcasted_iota(jnp.int32, (T, T), 0)
    col = jax.lax.broadcasted_iota(jnp.int32, (T, T), 1)
    mask = jnp.where(row >= col, 0.0, -1e30).astype(jnp.bfloat16)

    def wspec(a):
        return pl.BlockSpec((1,) + a.shape[1:], lambda b, l: (l, 0, 0))

    return pl.pallas_call(
        functools.partial(blocks_kernel, num_heads=num_heads, ff_chunk=ff_chunk),
        out_shape=jax.ShapeDtypeStruct((B, T, C), jnp.bfloat16),
        grid=(B // Bb, L),
        in_specs=[pl.BlockSpec((Bb, T, C), lambda b, l: (b, 0, 0)),
                  pl.BlockSpec((T, T), lambda b, l: (0, 0))]
                 + [wspec(a) for a in stacked],
        out_specs=pl.BlockSpec((Bb, T, C), lambda b, l: (b, 0, 0)),
        scratch_shapes=[pltpu.VMEM((Bb * T, C), jnp.float32),     # residual
                        pltpu.VMEM((Bb * T, C), jnp.bfloat16)],   # head concat
        compiler_params=pltpu.CompilerParams(
            dimension_semantics=("parallel", "arbitrary"),
            vmem_limit_bytes=_vmem_limit_bytes()),
    )(x, mask, *stacked)


# ------------------------------- lm_head ----------------------------------- #

def lm_head_kernel(x_ref, w_ref, b_ref, o_ref):
    o_ref[...] = (jnp.dot(x_ref[...], w_ref[...],
                          preferred_element_type=jnp.float32) + b_ref[...])


def lm_head_forward(x, wh, bh):
    B, T, C = x.shape
    V = wh.shape[1]
    N = B * T
    xf = x.reshape(N, C)                   # fold batch into sublane rows (bf16)
    tn = min(N, 512)
    tv = min(V, 2048)
    # Weight-stationary: vocab tile outer, row tile inner -> the (C, tv) weight
    # block index is constant across the inner sweep and stays VMEM-resident.
    out = pl.pallas_call(
        lm_head_kernel,
        out_shape=jax.ShapeDtypeStruct((N, V), jnp.float32),
        grid=(pl.cdiv(V, tv), pl.cdiv(N, tn)),
        in_specs=[pl.BlockSpec((tn, C), lambda vi, ri: (ri, 0)),
                  pl.BlockSpec((C, tv), lambda vi, ri: (0, vi)),
                  pl.BlockSpec((1, tv), lambda vi, ri: (0, vi))],
        out_specs=pl.BlockSpec((tn, tv), lambda vi, ri: (ri, vi)),
        compiler_params=pltpu.CompilerParams(
            dimension_semantics=("parallel", "arbitrary")),
    )(xf, wh, bh)
    return out.reshape(B, T, V)


# ------------------------------ full forward -------------------------------- #

def transformer_forward(tokens, params, num_heads):
    """tokens: (B, T) int32. Returns (logits (B,T,V), None) — the y=None path."""
    tok_table, pos_table, stacked, wh, bh = params
    B, T = tokens.shape
    # Embedding gathers remain plain-JAX glue.
    x = tok_table[tokens] + pos_table[:T][None, :, :]
    x = blocks_forward(x, stacked, num_heads)
    logits = lm_head_forward(x, wh, bh)
    return logits, None


# ------------------------ pure-JAX reference (same math) -------------------- #

def reference_forward(tokens, params, num_heads):
    tok_table, pos_table, stacked, wh, bh = params
    ln1g, ln1b, wqkv, wp, bp, ln2g, ln2b, w1, b1, w2, b2 = stacked
    B, T = tokens.shape
    C = tok_table.shape[1]
    hs = C // num_heads
    L = ln1g.shape[0]
    x = tok_table[tokens] + pos_table[:T][None, :, :]
    causal = jnp.tril(jnp.ones((T, T), dtype=bool))
    for l in range(L):
        xn = _layernorm(x, ln1g[l], ln1b[l]).astype(jnp.bfloat16)
        qkv = jnp.einsum('btc,cd->btd', xn, wqkv[l],
                         preferred_element_type=jnp.float32).astype(jnp.bfloat16)
        q, k, v = qkv[..., :C], qkv[..., C:2 * C], qkv[..., 2 * C:]
        heads = []
        for h in range(num_heads):
            q_h = q[..., h * hs:(h + 1) * hs]
            k_h = k[..., h * hs:(h + 1) * hs]
            v_h = v[..., h * hs:(h + 1) * hs]
            wei = jnp.einsum('bqd,bkd->bqk', q_h, k_h,
                             preferred_element_type=jnp.float32) * (C ** -0.5)
            wei = jnp.where(causal, wei, -1e30)
            wei = wei - wei.max(axis=-1, keepdims=True)
            e = jnp.exp(wei)
            p = (e / e.sum(axis=-1, keepdims=True)).astype(jnp.bfloat16)
            heads.append(jnp.einsum('bqk,bkd->bqd', p, v_h,
                                    preferred_element_type=jnp.float32))
        sa = jnp.concatenate(heads, axis=-1).astype(jnp.bfloat16)
        sa = jnp.einsum('btc,cd->btd', sa, wp[l],
                        preferred_element_type=jnp.float32) + bp[l]
        x = x + sa
        xn2 = _layernorm(x, ln2g[l], ln2b[l]).astype(jnp.bfloat16)
        h1 = jnp.einsum('btc,cf->btf', xn2, w1[l],
                        preferred_element_type=jnp.float32) + b1[l]
        h1 = jnp.maximum(h1, 0.0).astype(jnp.bfloat16)
        ff = jnp.einsum('btf,fc->btc', h1, w2[l],
                        preferred_element_type=jnp.float32) + b2[l]
        x = x + ff
    return jnp.einsum('btc,cv->btv', x.astype(jnp.bfloat16), wh,
                      preferred_element_type=jnp.float32) + bh


# ------------------------------ init / main --------------------------------- #

def init_params(key, vocab_size, embd_size, block_size, num_heads, num_layers):
    C, V, L = embd_size, vocab_size, num_layers
    s = 0.02
    ks = iter(jax.random.split(key, 32))
    bf16 = jnp.bfloat16

    def nrm(shape):
        return jax.random.normal(next(ks), shape, jnp.float32) * s

    tok_table = nrm((V, C))
    pos_table = nrm((block_size, C))

    ln1g = 1.0 + nrm((L, 1, C))
    ln1b = nrm((L, 1, C))
    # Fused per-head projections: head h owns columns [h*hs,(h+1)*hs) of each
    # (C, C) projection; q|k|v concatenated along the last axis -> (C, 3C).
    wq, wk, wv = nrm((L, C, C)), nrm((L, C, C)), nrm((L, C, C))
    wqkv = jnp.concatenate([wq, wk, wv], axis=-1).astype(bf16)
    wp = nrm((L, C, C)).astype(bf16)
    bp = nrm((L, 1, C))
    ln2g = 1.0 + nrm((L, 1, C))
    ln2b = nrm((L, 1, C))
    w1 = nrm((L, C, 4 * C)).astype(bf16)
    b1 = nrm((L, 1, 4 * C))
    w2 = nrm((L, 4 * C, C)).astype(bf16)
    b2 = nrm((L, 1, C))

    wh = nrm((C, V)).astype(bf16)
    bh = nrm((1, V))

    stacked = (ln1g, ln1b, wqkv, wp, bp, ln2g, ln2b, w1, b1, w2, b2)
    return tok_table, pos_table, stacked, wh, bh


if __name__ == "__main__":
    vocab_size = 16
    embd_size = 32
    block_size = 8
    num_heads = 4
    num_layers = 2
    B, T = 2, 8

    key = jax.random.PRNGKey(0)
    pkey, xkey = jax.random.split(key)
    params = init_params(pkey, vocab_size, embd_size, block_size,
                         num_heads, num_layers)
    tokens = jax.random.randint(xkey, (B, T), 0, vocab_size, dtype=jnp.int32)

    logits, loss = transformer_forward(tokens, params, num_heads)
    logits = jax.block_until_ready(logits)

    ref = jax.block_until_ready(reference_forward(tokens, params, num_heads))
    assert logits.shape == (B, T, vocab_size)
    assert loss is None
    err = float(jnp.max(jnp.abs(logits - ref)))
    assert err < 2e-3, f"max abs err {err}"

    print("KERNEL_OK")
</pallas_src>

<mosaic_0001>
module attributes {stable_mosaic.version = 11 : i64} {
  func.func @blocks_kernel(%arg0: i32, %arg1: i32, %arg2: memref<1x8x32xf32, #tpu.memory_space<vmem>>, %arg3: memref<8x8xbf16, #tpu.memory_space<vmem>>, %arg4: memref<1x1x32xf32, #tpu.memory_space<vmem>>, %arg5: memref<1x1x32xf32, #tpu.memory_space<vmem>>, %arg6: memref<1x32x96xbf16, #tpu.memory_space<vmem>>, %arg7: memref<1x32x32xbf16, #tpu.memory_space<vmem>>, %arg8: memref<1x1x32xf32, #tpu.memory_space<vmem>>, %arg9: memref<1x1x32xf32, #tpu.memory_space<vmem>>, %arg10: memref<1x1x32xf32, #tpu.memory_space<vmem>>, %arg11: memref<1x32x128xbf16, #tpu.memory_space<vmem>>, %arg12: memref<1x1x128xf32, #tpu.memory_space<vmem>>, %arg13: memref<1x128x32xbf16, #tpu.memory_space<vmem>>, %arg14: memref<1x1x32xf32, #tpu.memory_space<vmem>>, %arg15: memref<1x8x32xbf16, #tpu.memory_space<vmem>>, %arg16: memref<8x32xf32, #tpu.memory_space<vmem>>, %arg17: memref<8x32xbf16, #tpu.memory_space<vmem>>) attributes {dimension_semantics = [#tpu.dimension_semantics<parallel>, #tpu.dimension_semantics<arbitrary>], iteration_bounds = array<i64: 2, 2>, scalar_prefetch = 0 : i64, scratch_operands = 2 : i64, tpu.core_type = #tpu.core_type<tc>, window_params = [{transform_indices = @transform_0, window_bounds = array<i64: 1, 8, 32>}, {pipeline_mode = #tpu.pipeline_mode<synchronous>, transform_indices = @transform_1, window_bounds = array<i64: 8, 8>}, {transform_indices = @transform_2, window_bounds = array<i64: 1, 1, 32>}, {transform_indices = @transform_3, window_bounds = array<i64: 1, 1, 32>}, {transform_indices = @transform_4, window_bounds = array<i64: 1, 32, 96>}, {transform_indices = @transform_5, window_bounds = array<i64: 1, 32, 32>}, {transform_indices = @transform_6, window_bounds = array<i64: 1, 1, 32>}, {transform_indices = @transform_7, window_bounds = array<i64: 1, 1, 32>}, {transform_indices = @transform_8, window_bounds = array<i64: 1, 1, 32>}, {transform_indices = @transform_9, window_bounds = array<i64: 1, 32, 128>}, {transform_indices = @transform_10, window_bounds = array<i64: 1, 1, 128>}, {transform_indices = @transform_11, window_bounds = array<i64: 1, 128, 32>}, {transform_indices = @transform_12, window_bounds = array<i64: 1, 1, 32>}, {transform_indices = @transform_13, window_bounds = array<i64: 1, 8, 32>}]} {
    %c0_i32 = arith.constant 0 : i32
    %0 = arith.cmpi eq, %arg1, %c0_i32 : i32
    %1 = arith.extui %0 : i1 to i32
    %c0_i32_0 = arith.constant 0 : i32
    %2 = arith.cmpi ne, %1, %c0_i32_0 : i32
    scf.if %2 {
      %c0_81 = arith.constant 0 : index
      %c0_82 = arith.constant 0 : index
      %c0_83 = arith.constant 0 : index
      %182 = vector.load %arg2[%c0_81, %c0_82, %c0_83] : memref<1x8x32xf32, #tpu.memory_space<vmem>>, vector<1x8x32xf32>
      %183 = vector.shape_cast %182 : vector<1x8x32xf32> to vector<8x32xf32>
      %c0_84 = arith.constant 0 : index
      %c0_85 = arith.constant 0 : index
      %184 = vector.load %arg16[%c0_84, %c0_85] : memref<8x32xf32, #tpu.memory_space<vmem>>, vector<8x32xf32>
      tpu.vector_store %arg16[%c0_84, %c0_85], %183 {strides = array<i32>} : memref<8x32xf32, #tpu.memory_space<vmem>>, vector<8x32xf32>,
    } else {
    }
    %c0 = arith.constant 0 : index
    %c0_1 = arith.constant 0 : index
    %3 = vector.load %arg16[%c0, %c0_1] : memref<8x32xf32, #tpu.memory_space<vmem>>, vector<8x32xf32>
    %c0_2 = arith.constant 0 : index
    %c0_3 = arith.constant 0 : index
    %4 = vector.load %arg3[%c0_2, %c0_3] : memref<8x8xbf16, #tpu.memory_space<vmem>>, vector<8x8xbf16>
    %5 = arith.extf %4 : vector<8x8xbf16> to vector<8x8xf32>
    %c0_4 = arith.constant 0 : index
    %c0_5 = arith.constant 0 : index
    %c0_6 = arith.constant 0 : index
    %6 = vector.load %arg4[%c0_4, %c0_5, %c0_6] : memref<1x1x32xf32, #tpu.memory_space<vmem>>, vector<1x1x32xf32>
    %7 = vector.shape_cast %6 : vector<1x1x32xf32> to vector<1x32xf32>
    %c0_7 = arith.constant 0 : index
    %c0_8 = arith.constant 0 : index
    %c0_9 = arith.constant 0 : index
    %8 = vector.load %arg5[%c0_7, %c0_8, %c0_9] : memref<1x1x32xf32, #tpu.memory_space<vmem>>, vector<1x1x32xf32>
    %9 = vector.shape_cast %8 : vector<1x1x32xf32> to vector<1x32xf32>
    %cst = arith.constant dense<0.000000e+00> : vector<8xf32>
    %10 = vector.multi_reduction <add>, %3, %cst [1] : vector<8x32xf32> to vector<8xf32>
    %11 = vector.shape_cast %10 : vector<8xf32> to vector<8x1xf32>
    %cst_10 = arith.constant 3.200000e+01 : f32
    %12 = vector.broadcast %cst_10 : f32 to vector<8x1xf32>
    %13 = arith.divf %11, %12 : vector<8x1xf32>
    %14 = vector.broadcast %13 : vector<8x1xf32> to vector<8x32xf32>
    %15 = arith.subf %3, %14 : vector<8x32xf32>
    %16 = arith.mulf %15, %15 : vector<8x32xf32>
    %cst_11 = arith.constant dense<0.000000e+00> : vector<8xf32>
    %17 = vector.multi_reduction <add>, %16, %cst_11 [1] : vector<8x32xf32> to vector<8xf32>
    %18 = vector.shape_cast %17 : vector<8xf32> to vector<8x1xf32>
    %cst_12 = arith.constant 3.200000e+01 : f32
    %19 = vector.broadcast %cst_12 : f32 to vector<8x1xf32>
    %20 = arith.divf %18, %19 : vector<8x1xf32>
    %21 = vector.broadcast %13 : vector<8x1xf32> to vector<8x32xf32>
    %22 = arith.subf %3, %21 : vector<8x32xf32>
    %cst_13 = arith.constant 9.99999974E-6 : f32
    %23 = vector.broadcast %cst_13 : f32 to vector<8x1xf32>
    %24 = arith.addf %20, %23 : vector<8x1xf32>
    %25 = math.rsqrt %24 : vector<8x1xf32>
    %26 = vector.broadcast %25 : vector<8x1xf32> to vector<8x32xf32>
    %27 = arith.mulf %22, %26 : vector<8x32xf32>
    %28 = vector.broadcast %7 : vector<1x32xf32> to vector<8x32xf32>
    %29 = arith.mulf %27, %28 : vector<8x32xf32>
    %30 = vector.broadcast %9 : vector<1x32xf32> to vector<8x32xf32>
    %31 = arith.addf %29, %30 : vector<8x32xf32>
    %32 = arith.truncf %31 : vector<8x32xf32> to vector<8x32xbf16>
    %c0_14 = arith.constant 0 : index
    %c0_15 = arith.constant 0 : index
    %c0_16 = arith.constant 0 : index
    %33 = vector.load %arg6[%c0_14, %c0_15, %c0_16] : memref<1x32x96xbf16, #tpu.memory_space<vmem>>, vector<1x32x96xbf16>
    %34 = vector.shape_cast %33 : vector<1x32x96xbf16> to vector<32x96xbf16>
    %cst_17 = arith.constant dense<0.000000e+00> : vector<8x96xf32>
    %35 = tpu.matmul %32, %34, %cst_17 {dimension_numbers = #tpu.dot_dimension_numbers<[1], [0], [0], [1], [0, 0, 1, 1], [], []>} : vector<8x32xbf16>, vector<32x96xbf16>, vector<8x96xf32> -> vector<8x96xf32>
    %36 = arith.truncf %35 : vector<8x96xf32> to vector<8x96xbf16>
    %37 = vector.extract_strided_slice %36 {offsets = [0, 0], sizes = [8, 32], strides = [1, 1]} : vector<8x96xbf16> to vector<8x32xbf16>
    %38 = vector.extract_strided_slice %36 {offsets = [0, 32], sizes = [8, 32], strides = [1, 1]} : vector<8x96xbf16> to vector<8x32xbf16>
    %39 = vector.extract_strided_slice %36 {offsets = [0, 64], sizes = [8, 32], strides = [1, 1]} : vector<8x96xbf16> to vector<8x32xbf16>
    %40 = vector.extract_strided_slice %37 {offsets = [0, 0], sizes = [8, 8], strides = [1, 1]} : vector<8x32xbf16> to vector<8x8xbf16>
    %41 = vector.extract_strided_slice %38 {offsets = [0, 0], sizes = [8, 8], strides = [1, 1]} : vector<8x32xbf16> to vector<8x8xbf16>
    %42 = vector.extract_strided_slice %39 {offsets = [0, 0], sizes = [8, 8], strides = [1, 1]} : vector<8x32xbf16> to vector<8x8xbf16>
    "tpu.trace_start"() <{level = 10 : i32, message = "qd,kd->qk"}> : () -> ()
    %cst_18 = arith.constant dense<0.000000e+00> : vector<8x8xf32>
    %43 = tpu.matmul %40, %41, %cst_18 {dimension_numbers = #tpu.dot_dimension_numbers<[1], [1], [0], [0], [0, 0, 1, 0], [], []>} : vector<8x8xbf16>, vector<8x8xbf16>, vector<8x8xf32> -> vector<8x8xf32>
    "tpu.trace_stop"() : () -> ()
    %cst_19 = arith.constant 0.176776692 : f32
    %44 = vector.broadcast %cst_19 : f32 to vector<8x8xf32>
    %45 = arith.mulf %43, %44 : vector<8x8xf32>
    %46 = arith.addf %45, %5 : vector<8x8xf32>
    %cst_20 = arith.constant dense<0xFF800000> : vector<8xf32>
    %47 = vector.multi_reduction <maximumf>, %46, %cst_20 [1] : vector<8x8xf32> to vector<8xf32>
    %48 = vector.shape_cast %47 : vector<8xf32> to vector<8x1xf32>
    %49 = vector.broadcast %48 : vector<8x1xf32> to vector<8x8xf32>
    %50 = arith.subf %46, %49 : vector<8x8xf32>
    %51 = math.exp %50 : vector<8x8xf32>
    %cst_21 = arith.constant dense<0.000000e+00> : vector<8xf32>
    %52 = vector.multi_reduction <add>, %51, %cst_21 [1] : vector<8x8xf32> to vector<8xf32>
    %53 = vector.shape_cast %52 : vector<8xf32> to vector<8x1xf32>
    %54 = tpu.reciprocal %53 {approx = true} : vector<8x1xf32> -> vector<8x1xf32>
    %55 = vector.broadcast %54 : vector<8x1xf32> to vector<8x8xf32>
    %56 = arith.mulf %51, %55 : vector<8x8xf32>
    %57 = arith.truncf %56 : vector<8x8xf32> to vector<8x8xbf16>
    %cst_22 = arith.constant dense<0.000000e+00> : vector<8x8xf32>
    %58 = tpu.matmul %57, %42, %cst_22 {dimension_numbers = #tpu.dot_dimension_numbers<[1], [0], [0], [1], [0, 0, 1, 1], [], []>} : vector<8x8xbf16>, vector<8x8xbf16>, vector<8x8xf32> -> vector<8x8xf32>
    %59 = arith.truncf %58 : vector<8x8xf32> to vector<8x8xbf16>
    %c0_23 = arith.constant 0 : index
    %c0_24 = arith.constant 0 : index
    %60 = vector.load %arg17[%c0_23, %c0_24] : memref<8x32xbf16, #tpu.memory_space<vmem>>, vector<8x8xbf16>
    tpu.vector_store %arg17[%c0_23, %c0_24], %59 {strides = array<i32>} : memref<8x32xbf16, #tpu.memory_space<vmem>>, vector<8x8xbf16>,
    %61 = vector.extract_strided_slice %37 {offsets = [0, 8], sizes = [8, 8], strides = [1, 1]} : vector<8x32xbf16> to vector<8x8xbf16>
    %62 = vector.extract_strided_slice %38 {offsets = [0, 8], sizes = [8, 8], strides = [1, 1]} : vector<8x32xbf16> to vector<8x8xbf16>
    %63 = vector.extract_strided_slice %39 {offsets = [0, 8], sizes = [8, 8], strides = [1, 1]} : vector<8x32xbf16> to vector<8x8xbf16>
    "tpu.trace_start"() <{level = 10 : i32, message = "qd,kd->qk"}> : () -> ()
    %cst_25 = arith.constant dense<0.000000e+00> : vector<8x8xf32>
    %64 = tpu.matmul %61, %62, %cst_25 {dimension_numbers = #tpu.dot_dimension_numbers<[1], [1], [0], [0], [0, 0, 1, 0], [], []>} : vector<8x8xbf16>, vector<8x8xbf16>, vector<8x8xf32> -> vector<8x8xf32>
    "tpu.trace_stop"() : () -> ()
    %cst_26 = arith.constant 0.176776692 : f32
    %65 = vector.broadcast %cst_26 : f32 to vector<8x8xf32>
    %66 = arith.mulf %64, %65 : vector<8x8xf32>
    %67 = arith.addf %66, %5 : vector<8x8xf32>
    %cst_27 = arith.constant dense<0xFF800000> : vector<8xf32>
    %68 = vector.multi_reduction <maximumf>, %67, %cst_27 [1] : vector<8x8xf32> to vector<8xf32>
    %69 = vector.shape_cast %68 : vector<8xf32> to vector<8x1xf32>
    %70 = vector.broadcast %69 : vector<8x1xf32> to vector<8x8xf32>
    %71 = arith.subf %67, %70 : vector<8x8xf32>
    %72 = math.exp %71 : vector<8x8xf32>
    %cst_28 = arith.constant dense<0.000000e+00> : vector<8xf32>
    %73 = vector.multi_reduction <add>, %72, %cst_28 [1] : vector<8x8xf32> to vector<8xf32>
    %74 = vector.shape_cast %73 : vector<8xf32> to vector<8x1xf32>
    %75 = tpu.reciprocal %74 {approx = true} : vector<8x1xf32> -> vector<8x1xf32>
    %76 = vector.broadcast %75 : vector<8x1xf32> to vector<8x8xf32>
    %77 = arith.mulf %72, %76 : vector<8x8xf32>
    %78 = arith.truncf %77 : vector<8x8xf32> to vector<8x8xbf16>
    %cst_29 = arith.constant dense<0.000000e+00> : vector<8x8xf32>
    %79 = tpu.matmul %78, %63, %cst_29 {dimension_numbers = #tpu.dot_dimension_numbers<[1], [0], [0], [1], [0, 0, 1, 1], [], []>} : vector<8x8xbf16>, vector<8x8xbf16>, vector<8x8xf32> -> vector<8x8xf32>
    %80 = arith.truncf %79 : vector<8x8xf32> to vector<8x8xbf16>
    %c0_30 = arith.constant 0 : index
    %c8 = arith.constant 8 : index
    %81 = vector.load %arg17[%c0_30, %c8] : memref<8x32xbf16, #tpu.memory_space<vmem>>, vector<8x8xbf16>
    tpu.vector_store %arg17[%c0_30, %c8], %80 {strides = array<i32>} : memref<8x32xbf16, #tpu.memory_space<vmem>>, vector<8x8xbf16>,
    %82 = vector.extract_strided_slice %37 {offsets = [0, 16], sizes = [8, 8], strides = [1, 1]} : vector<8x32xbf16> to vector<8x8xbf16>
    %83 = vector.extract_strided_slice %38 {offsets = [0, 16], sizes = [8, 8], strides = [1, 1]} : vector<8x32xbf16> to vector<8x8xbf16>
    %84 = vector.extract_strided_slice %39 {offsets = [0, 16], sizes = [8, 8], strides = [1, 1]} : vector<8x32xbf16> to vector<8x8xbf16>
    "tpu.trace_start"() <{level = 10 : i32, message = "qd,kd->qk"}> : () -> ()
    %cst_31 = arith.constant dense<0.000000e+00> : vector<8x8xf32>
    %85 = tpu.matmul %82, %83, %cst_31 {dimension_numbers = #tpu.dot_dimension_numbers<[1], [1], [0], [0], [0, 0, 1, 0], [], []>} : vector<8x8xbf16>, vector<8x8xbf16>, vector<8x8xf32> -> vector<8x8xf32>
    "tpu.trace_stop"() : () -> ()
    %cst_32 = arith.constant 0.176776692 : f32
    %86 = vector.broadcast %cst_32 : f32 to vector<8x8xf32>
    %87 = arith.mulf %85, %86 : vector<8x8xf32>
    %88 = arith.addf %87, %5 : vector<8x8xf32>
    %cst_33 = arith.constant dense<0xFF800000> : vector<8xf32>
    %89 = vector.multi_reduction <maximumf>, %88, %cst_33 [1] : vector<8x8xf32> to vector<8xf32>
    %90 = vector.shape_cast %89 : vector<8xf32> to vector<8x1xf32>
    %91 = vector.broadcast %90 : vector<8x1xf32> to vector<8x8xf32>
    %92 = arith.subf %88, %91 : vector<8x8xf32>
    %93 = math.exp %92 : vector<8x8xf32>
    %cst_34 = arith.constant dense<0.000000e+00> : vector<8xf32>
    %94 = vector.multi_reduction <add>, %93, %cst_34 [1] : vector<8x8xf32> to vector<8xf32>
    %95 = vector.shape_cast %94 : vector<8xf32> to vector<8x1xf32>
    %96 = tpu.reciprocal %95 {approx = true} : vector<8x1xf32> -> vector<8x1xf32>
    %97 = vector.broadcast %96 : vector<8x1xf32> to vector<8x8xf32>
    %98 = arith.mulf %93, %97 : vector<8x8xf32>
    %99 = arith.truncf %98 : vector<8x8xf32> to vector<8x8xbf16>
    %cst_35 = arith.constant dense<0.000000e+00> : vector<8x8xf32>
    %100 = tpu.matmul %99, %84, %cst_35 {dimension_numbers = #tpu.dot_dimension_numbers<[1], [0], [0], [1], [0, 0, 1, 1], [], []>} : vector<8x8xbf16>, vector<8x8xbf16>, vector<8x8xf32> -> vector<8x8xf32>
    %101 = arith.truncf %100 : vector<8x8xf32> to vector<8x8xbf16>
    %c0_36 = arith.constant 0 : index
    %c16 = arith.constant 16 : index
    %102 = vector.load %arg17[%c0_36, %c16] : memref<8x32xbf16, #tpu.memory_space<vmem>>, vector<8x8xbf16>
    tpu.vector_store %arg17[%c0_36, %c16], %101 {strides = array<i32>} : memref<8x32xbf16, #tpu.memory_space<vmem>>, vector<8x8xbf16>,
    %103 = vector.extract_strided_slice %37 {offsets = [0, 24], sizes = [8, 8], strides = [1, 1]} : vector<8x32xbf16> to vector<8x8xbf16>
    %104 = vector.extract_strided_slice %38 {offsets = [0, 24], sizes = [8, 8], strides = [1, 1]} : vector<8x32xbf16> to vector<8x8xbf16>
    %105 = vector.extract_strided_slice %39 {offsets = [0, 24], sizes = [8, 8], strides = [1, 1]} : vector<8x32xbf16> to vector<8x8xbf16>
    "tpu.trace_start"() <{level = 10 : i32, message = "qd,kd->qk"}> : () -> ()
    %cst_37 = arith.constant dense<0.000000e+00> : vector<8x8xf32>
    %106 = tpu.matmul %103, %104, %cst_37 {dimension_numbers = #tpu.dot_dimension_numbers<[1], [1], [0], [0], [0, 0, 1, 0], [], []>} : vector<8x8xbf16>, vector<8x8xbf16>, vector<8x8xf32> -> vector<8x8xf32>
    "tpu.trace_stop"() : () -> ()
    %cst_38 = arith.constant 0.176776692 : f32
    %107 = vector.broadcast %cst_38 : f32 to vector<8x8xf32>
    %108 = arith.mulf %106, %107 : vector<8x8xf32>
    %109 = arith.addf %108, %5 : vector<8x8xf32>
    %cst_39 = arith.constant dense<0xFF800000> : vector<8xf32>
    %110 = vector.multi_reduction <maximumf>, %109, %cst_39 [1] : vector<8x8xf32> to vector<8xf32>
    %111 = vector.shape_cast %110 : vector<8xf32> to vector<8x1xf32>
    %112 = vector.broadcast %111 : vector<8x1xf32> to vector<8x8xf32>
    %113 = arith.subf %109, %112 : vector<8x8xf32>
    %114 = math.exp %113 : vector<8x8xf32>
    %cst_40 = arith.constant dense<0.000000e+00> : vector<8xf32>
    %115 = vector.multi_reduction <add>, %114, %cst_40 [1] : vector<8x8xf32> to vector<8xf32>
    %116 = vector.shape_cast %115 : vector<8xf32> to vector<8x1xf32>
    %117 = tpu.reciprocal %116 {approx = true} : vector<8x1xf32> -> vector<8x1xf32>
    %118 = vector.broadcast %117 : vector<8x1xf32> to vector<8x8xf32>
    %119 = arith.mulf %114, %118 : vector<8x8xf32>
    %120 = arith.truncf %119 : vector<8x8xf32> to vector<8x8xbf16>
    %cst_41 = arith.constant dense<0.000000e+00> : vector<8x8xf32>
    %121 = tpu.matmul %120, %105, %cst_41 {dimension_numbers = #tpu.dot_dimension_numbers<[1], [0], [0], [1], [0, 0, 1, 1], [], []>} : vector<8x8xbf16>, vector<8x8xbf16>, vector<8x8xf32> -> vector<8x8xf32>
    %122 = arith.truncf %121 : vector<8x8xf32> to vector<8x8xbf16>
    %c0_42 = arith.constant 0 : index
    %c24 = arith.constant 24 : index
    %123 = vector.load %arg17[%c0_42, %c24] : memref<8x32xbf16, #tpu.memory_space<vmem>>, vector<8x8xbf16>
    tpu.vector_store %arg17[%c0_42, %c24], %122 {strides = array<i32>} : memref<8x32xbf16, #tpu.memory_space<vmem>>, vector<8x8xbf16>,
    %c0_43 = arith.constant 0 : index
    %c0_44 = arith.constant 0 : index
    %124 = vector.load %arg17[%c0_43, %c0_44] : memref<8x32xbf16, #tpu.memory_space<vmem>>, vector<8x32xbf16>
    %c0_45 = arith.constant 0 : index
    %c0_46 = arith.constant 0 : index
    %c0_47 = arith.constant 0 : index
    %125 = vector.load %arg7[%c0_45, %c0_46, %c0_47] : memref<1x32x32xbf16, #tpu.memory_space<vmem>>, vector<1x32x32xbf16>
    %126 = vector.shape_cast %125 : vector<1x32x32xbf16> to vector<32x32xbf16>
    %cst_48 = arith.constant dense<0.000000e+00> : vector<8x32xf32>
    %127 = tpu.matmul %124, %126, %cst_48 {dimension_numbers = #tpu.dot_dimension_numbers<[1], [0], [0], [1], [0, 0, 1, 1], [], []>} : vector<8x32xbf16>, vector<32x32xbf16>, vector<8x32xf32> -> vector<8x32xf32>
    %c0_49 = arith.constant 0 : index
    %c0_50 = arith.constant 0 : index
    %c0_51 = arith.constant 0 : index
    %128 = vector.load %arg8[%c0_49, %c0_50, %c0_51] : memref<1x1x32xf32, #tpu.memory_space<vmem>>, vector<1x1x32xf32>
    %129 = vector.shape_cast %128 : vector<1x1x32xf32> to vector<1x32xf32>
    %130 = vector.broadcast %129 : vector<1x32xf32> to vector<8x32xf32>
    %131 = arith.addf %127, %130 : vector<8x32xf32>
    %132 = arith.addf %3, %131 : vector<8x32xf32>
    %c0_52 = arith.constant 0 : index
    %c0_53 = arith.constant 0 : index
    %c0_54 = arith.constant 0 : index
    %133 = vector.load %arg9[%c0_52, %c0_53, %c0_54] : memref<1x1x32xf32, #tpu.memory_space<vmem>>, vector<1x1x32xf32>
    %134 = vector.shape_cast %133 : vector<1x1x32xf32> to vector<1x32xf32>
    %c0_55 = arith.constant 0 : index
    %c0_56 = arith.constant 0 : index
    %c0_57 = arith.constant 0 : index
    %135 = vector.load %arg10[%c0_55, %c0_56, %c0_57] : memref<1x1x32xf32, #tpu.memory_space<vmem>>, vector<1x1x32xf32>
    %136 = vector.shape_cast %135 : vector<1x1x32xf32> to vector<1x32xf32>
    %cst_58 = arith.constant dense<0.000000e+00> : vector<8xf32>
    %137 = vector.multi_reduction <add>, %132, %cst_58 [1] : vector<8x32xf32> to vector<8xf32>
    %138 = vector.shape_cast %137 : vector<8xf32> to vector<8x1xf32>
    %cst_59 = arith.constant 3.200000e+01 : f32
    %139 = vector.broadcast %cst_59 : f32 to vector<8x1xf32>
    %140 = arith.divf %138, %139 : vector<8x1xf32>
    %141 = vector.broadcast %140 : vector<8x1xf32> to vector<8x32xf32>
    %142 = arith.subf %132, %141 : vector<8x32xf32>
    %143 = arith.mulf %142, %142 : vector<8x32xf32>
    %cst_60 = arith.constant dense<0.000000e+00> : vector<8xf32>
    %144 = vector.multi_reduction <add>, %143, %cst_60 [1] : vector<8x32xf32> to vector<8xf32>
    %145 = vector.shape_cast %144 : vector<8xf32> to vector<8x1xf32>
    %cst_61 = arith.constant 3.200000e+01 : f32
    %146 = vector.broadcast %cst_61 : f32 to vector<8x1xf32>
    %147 = arith.divf %145, %146 : vector<8x1xf32>
    %148 = vector.broadcast %140 : vector<8x1xf32> to vector<8x32xf32>
    %149 = arith.subf %132, %148 : vector<8x32xf32>
    %cst_62 = arith.constant 9.99999974E-6 : f32
    %150 = vector.broadcast %cst_62 : f32 to vector<8x1xf32>
    %151 = arith.addf %147, %150 : vector<8x1xf32>
    %152 = math.rsqrt %151 : vector<8x1xf32>
    %153 = vector.broadcast %152 : vector<8x1xf32> to vector<8x32xf32>
    %154 = arith.mulf %149, %153 : vector<8x32xf32>
    %155 = vector.broadcast %134 : vector<1x32xf32> to vector<8x32xf32>
    %156 = arith.mulf %154, %155 : vector<8x32xf32>
    %157 = vector.broadcast %136 : vector<1x32xf32> to vector<8x32xf32>
    %158 = arith.addf %156, %157 : vector<8x32xf32>
    %159 = arith.truncf %158 : vector<8x32xf32> to vector<8x32xbf16>
    %c0_63 = arith.constant 0 : index
    %c0_64 = arith.constant 0 : index
    %c0_65 = arith.constant 0 : index
    %160 = vector.load %arg11[%c0_63, %c0_64, %c0_65] : memref<1x32x128xbf16, #tpu.memory_space<vmem>>, vector<1x32x128xbf16>
    %161 = vector.shape_cast %160 : vector<1x32x128xbf16> to vector<32x128xbf16>
    %c0_66 = arith.constant 0 : index
    %c0_67 = arith.constant 0 : index
    %c0_68 = arith.constant 0 : index
    %162 = vector.load %arg12[%c0_66, %c0_67, %c0_68] : memref<1x1x128xf32, #tpu.memory_space<vmem>>, vector<1x1x128xf32>
    %163 = vector.shape_cast %162 : vector<1x1x128xf32> to vector<1x128xf32>
    %cst_69 = arith.constant dense<0.000000e+00> : vector<8x128xf32>
    %164 = tpu.matmul %159, %161, %cst_69 {dimension_numbers = #tpu.dot_dimension_numbers<[1], [0], [0], [1], [0, 0, 1, 1], [], []>} : vector<8x32xbf16>, vector<32x128xbf16>, vector<8x128xf32> -> vector<8x128xf32>
    %165 = vector.broadcast %163 : vector<1x128xf32> to vector<8x128xf32>
    %166 = arith.addf %164, %165 : vector<8x128xf32>
    %cst_70 = arith.constant 0.000000e+00 : f32
    %167 = vector.broadcast %cst_70 : f32 to vector<8x128xf32>
    %168 = arith.maximumf %166, %167 : vector<8x128xf32>
    %169 = arith.truncf %168 : vector<8x128xf32> to vector<8x128xbf16>
    %c0_71 = arith.constant 0 : index
    %c0_72 = arith.constant 0 : index
    %c0_73 = arith.constant 0 : index
    %170 = vector.load %arg13[%c0_71, %c0_72, %c0_73] : memref<1x128x32xbf16, #tpu.memory_space<vmem>>, vector<1x128x32xbf16>
    %171 = vector.shape_cast %170 : vector<1x128x32xbf16> to vector<128x32xbf16>
    %cst_74 = arith.constant dense<0.000000e+00> : vector<8x32xf32>
    %172 = tpu.matmul %169, %171, %cst_74 {dimension_numbers = #tpu.dot_dimension_numbers<[1], [0], [0], [1], [0, 0, 1, 1], [], []>} : vector<8x128xbf16>, vector<128x32xbf16>, vector<8x32xf32> -> vector<8x32xf32>
    %173 = arith.addf %132, %172 : vector<8x32xf32>
    %c0_75 = arith.constant 0 : index
    %c0_76 = arith.constant 0 : index
    %c0_77 = arith.constant 0 : index
    %174 = vector.load %arg14[%c0_75, %c0_76, %c0_77] : memref<1x1x32xf32, #tpu.memory_space<vmem>>, vector<1x1x32xf32>
    %175 = vector.shape_cast %174 : vector<1x1x32xf32> to vector<1x32xf32>
    %176 = vector.broadcast %175 : vector<1x32xf32> to vector<8x32xf32>
    %177 = arith.addf %173, %176 : vector<8x32xf32>
    %c0_78 = arith.constant 0 : index
    %c0_79 = arith.constant 0 : index
    %178 = vector.load %arg16[%c0_78, %c0_79] : memref<8x32xf32, #tpu.memory_space<vmem>>, vector<8x32xf32>
    tpu.vector_store %arg16[%c0_78, %c0_79], %177 {strides = array<i32>} : memref<8x32xf32, #tpu.memory_space<vmem>>, vector<8x32xf32>,
    %c1_i32 = arith.constant 1 : i32
    %179 = arith.cmpi eq, %arg1, %c1_i32 : i32
    %180 = arith.extui %179 : i1 to i32
    %c0_i32_80 = arith.constant 0 : i32
    %181 = arith.cmpi ne, %180, %c0_i32_80 : i32
    scf.if %181 {
      %182 = vector.shape_cast %177 : vector<8x32xf32> to vector<1x8x32xf32>
      %183 = arith.truncf %182 : vector<1x8x32xf32> to vector<1x8x32xbf16>
      %c0_81 = arith.constant 0 : index
      %c0_82 = arith.constant 0 : index
      %c0_83 = arith.constant 0 : index
      %184 = vector.load %arg15[%c0_81, %c0_82, %c0_83] : memref<1x8x32xbf16, #tpu.memory_space<vmem>>, vector<1x8x32xbf16>
      tpu.vector_store %arg15[%c0_81, %c0_82, %c0_83], %183 {strides = array<i32>} : memref<1x8x32xbf16, #tpu.memory_space<vmem>>, vector<1x8x32xbf16>,
    } else {
    }
    return
  }
  func.func @transform_0(%arg0: i32, %arg1: i32) -> (i32, i32, i32) {
    %c0_i32 = arith.constant 0 : i32
    %c0_i32_0 = arith.constant 0 : i32
    %c0_i32_1 = arith.constant 0 : i32
    return %arg0, %c0_i32, %c0_i32_0 : i32, i32, i32
  }
  func.func @transform_1(%arg0: i32, %arg1: i32) -> (i32, i32) {
    %c0_i32 = arith.constant 0 : i32
    %c0_i32_0 = arith.constant 0 : i32
    %c0_i32_1 = arith.constant 0 : i32
    return %c0_i32, %c0_i32_0 : i32, i32
  }
  func.func @transform_2(%arg0: i32, %arg1: i32) -> (i32, i32, i32) {
    %c0_i32 = arith.constant 0 : i32
    %c0_i32_0 = arith.constant 0 : i32
    %c0_i32_1 = arith.constant 0 : i32
    return %arg1, %c0_i32, %c0_i32_0 : i32, i32, i32
  }
  func.func @transform_3(%arg0: i32, %arg1: i32) -> (i32, i32, i32) {
    %c0_i32 = arith.constant 0 : i32
    %c0_i32_0 = arith.constant 0 : i32
    %c0_i32_1 = arith.constant 0 : i32
    return %arg1, %c0_i32, %c0_i32_0 : i32, i32, i32
  }
  func.func @transform_4(%arg0: i32, %arg1: i32) -> (i32, i32, i32) {
    %c0_i32 = arith.constant 0 : i32
    %c0_i32_0 = arith.constant 0 : i32
    %c0_i32_1 = arith.constant 0 : i32
    return %arg1, %c0_i32, %c0_i32_0 : i32, i32, i32
  }
  func.func @transform_5(%arg0: i32, %arg1: i32) -> (i32, i32, i32) {
    %c0_i32 = arith.constant 0 : i32
    %c0_i32_0 = arith.constant 0 : i32
    %c0_i32_1 = arith.constant 0 : i32
    return %arg1, %c0_i32, %c0_i32_0 : i32, i32, i32
  }
  func.func @transform_6(%arg0: i32, %arg1: i32) -> (i32, i32, i32) {
    %c0_i32 = arith.constant 0 : i32
    %c0_i32_0 = arith.constant 0 : i32
    %c0_i32_1 = arith.constant 0 : i32
    return %arg1, %c0_i32, %c0_i32_0 : i32, i32, i32
  }
  func.func @transform_7(%arg0: i32, %arg1: i32) -> (i32, i32, i32) {
    %c0_i32 = arith.constant 0 : i32
    %c0_i32_0 = arith.constant 0 : i32
    %c0_i32_1 = arith.constant 0 : i32
    return %arg1, %c0_i32, %c0_i32_0 : i32, i32, i32
  }
  func.func @transform_8(%arg0: i32, %arg1: i32) -> (i32, i32, i32) {
    %c0_i32 = arith.constant 0 : i32
    %c0_i32_0 = arith.constant 0 : i32
    %c0_i32_1 = arith.constant 0 : i32
    return %arg1, %c0_i32, %c0_i32_0 : i32, i32, i32
  }
  func.func @transform_9(%arg0: i32, %arg1: i32) -> (i32, i32, i32) {
    %c0_i32 = arith.constant 0 : i32
    %c0_i32_0 = arith.constant 0 : i32
    %c0_i32_1 = arith.constant 0 : i32
    return %arg1, %c0_i32, %c0_i32_0 : i32, i32, i32
  }
  func.func @transform_10(%arg0: i32, %arg1: i32) -> (i32, i32, i32) {
    %c0_i32 = arith.constant 0 : i32
    %c0_i32_0 = arith.constant 0 : i32
    %c0_i32_1 = arith.constant 0 : i32
    return %arg1, %c0_i32, %c0_i32_0 : i32, i32, i32
  }
  func.func @transform_11(%arg0: i32, %arg1: i32) -> (i32, i32, i32) {
    %c0_i32 = arith.constant 0 : i32
    %c0_i32_0 = arith.constant 0 : i32
    %c0_i32_1 = arith.constant 0 : i32
    return %arg1, %c0_i32, %c0_i32_0 : i32, i32, i32
  }
  func.func @transform_12(%arg0: i32, %arg1: i32) -> (i32, i32, i32) {
    %c0_i32 = arith.constant 0 : i32
    %c0_i32_0 = arith.constant 0 : i32
    %c0_i32_1 = arith.constant 0 : i32
    return %arg1, %c0_i32, %c0_i32_0 : i32, i32, i32
  }
  func.func @transform_13(%arg0: i32, %arg1: i32) -> (i32, i32, i32) {
    %c0_i32 = arith.constant 0 : i32
    %c0_i32_0 = arith.constant 0 : i32
    %c0_i32_1 = arith.constant 0 : i32
    return %arg0, %c0_i32, %c0_i32_0 : i32, i32, i32
  }
}

</mosaic_0001>

<llo_original>
// kernel: tpu_custom_call.1
$region0: #{tpu_custom_call.1}
  #allocation0 [shape = 'u32[]', space=smem, size = 0x4, offset = 0x4, fixed_abs, tag = 'smem constant byte address 0x4 - core index']
  #allocation1 [shape = 'u32[144,128]{1,0:T(1,128)}', space=vmem, size = 0x12000, scoped, tag = 'internal scratch']
  #allocation2 [shape = 'f32[8,32]{1,0:T(8,128)}', space=vmem, size = 0x1000, scoped, tag = 'scratch operand']
  #allocation3 [shape = 'bf16[8,32]{1,0:T(8,128)(2,1)}', space=vmem, size = 0x800, scoped, tag = 'scratch operand']
  %s0 = inlined_call_operand.vmem [shape: f32[2,8,32], index: 0, kind: input, shape index: {}]
  %s1 = inlined_call_operand.vmem [shape: bf16[8,8], index: 1, kind: input, shape index: {}]
  %s2 = inlined_call_operand.vmem [shape: f32[2,1,32], index: 2, kind: input, shape index: {}]
  %s3 = inlined_call_operand.vmem [shape: f32[2,1,32], index: 3, kind: input, shape index: {}]
  %s4 = inlined_call_operand.vmem [shape: bf16[2,32,96], index: 4, kind: input, shape index: {}]
  %s5 = inlined_call_operand.vmem [shape: bf16[2,32,32], index: 5, kind: input, shape index: {}]
  %s6 = inlined_call_operand.vmem [shape: f32[2,1,32], index: 6, kind: input, shape index: {}]
  %s7 = inlined_call_operand.vmem [shape: f32[2,1,32], index: 7, kind: input, shape index: {}]
  %s8 = inlined_call_operand.vmem [shape: f32[2,1,32], index: 8, kind: input, shape index: {}]
  %s9 = inlined_call_operand.vmem [shape: bf16[2,32,128], index: 9, kind: input, shape index: {}]
  %s10 = inlined_call_operand.vmem [shape: f32[2,1,128], index: 10, kind: input, shape index: {}]
  %s11 = inlined_call_operand.vmem [shape: bf16[2,128,32], index: 11, kind: input, shape index: {}]
  %s12 = inlined_call_operand.vmem [shape: f32[2,1,32], index: 12, kind: input, shape index: {}]
  %s13 = inlined_call_operand.hbm [shape: bf16[2,8,32], index: 13, kind: output, shape index: {}]
  %s14 = sld [smem:[#allocation0]]
  $region93: #{tpu_custom_call.1} parent=0
    _
  %s16 = ssub.s32 1, %s14
  %s17 = scalar_select 0, %s16, %s14
  $region1: #{tpu_custom_call.1} parent=0
    #allocation4 [shape = 'u8[4096]{0}', space=vmem, size = 0x1000, scoped, tag = 'output window, operand 0']
    #allocation5 [shape = 's32[2]{0}', space=sflag, size = 0x8, scoped, tag = 'scoped memory for tpu_custom_call.1']
    %18 = vsyncpa [#allocation5], 0
    %s19 = scalar_lea.sflag [#allocation5], 1
    %20 = vsyncpa %s19, 0
    loop: start=0, step=1, limit=6
    $region2: #{tpu_custom_call.1} parent=1 // loop_pre_header
      _
    $region3: #{tpu_custom_call.1} parent=1 // loop_header
      %s22 = sphi 0, %s26
      %p23 = scmp.ge.s32.totalorder %s22, 6
      %s29 = sphi 0, %s41
      %s30 = sphi 0, %s37
      %s31 = sphi 0, %s29
      %s32 = sphi 0, %s30
      %s33 = sphi 0, %s31
      %s34 = sphi 0, %s32
      %s44 = sphi 0, %s46
      %s47 = sphi 0, %s44
      %s48 = sphi 0, %s47
      %s64 = sphi 0, %s48
      %s68 = sphi 0, %s68
      %s70 = sphi 0, %s68
      %s71 = sphi 0, %s70
      %s85 = sphi 0, %s71
      %s91 = sphi 0, %s93
      %s94 = sphi 0, %s91
      %s95 = sphi 0, %s94
      %s111 = sphi 0, %s95
      %s117 = sphi 0, %s119
      %s120 = sphi 0, %s117
      %s121 = sphi 0, %s120
      %s137 = sphi 0, %s121
      %s143 = sphi 0, %s145
      %s146 = sphi 0, %s143
      %s147 = sphi 0, %s146
      %s163 = sphi 0, %s147
      %s169 = sphi 0, %s171
      %s172 = sphi 0, %s169
      %s173 = sphi 0, %s172
      %s189 = sphi 0, %s173
      %s195 = sphi 0, %s197
      %s198 = sphi 0, %s195
      %s199 = sphi 0, %s198
      %s215 = sphi 0, %s199
      %s221 = sphi 0, %s223
      %s224 = sphi 0, %s221
      %s225 = sphi 0, %s224
      %s241 = sphi 0, %s225
      %s247 = sphi 0, %s249
      %s250 = sphi 0, %s247
      %s251 = sphi 0, %s250
      %s267 = sphi 0, %s251
      %s273 = sphi 0, %s275
      %s276 = sphi 0, %s273
      %s277 = sphi 0, %s276
      %s293 = sphi 0, %s277
      %s299 = sphi 0, %s301
      %s302 = sphi 0, %s299
      %s303 = sphi 0, %s302
      %s319 = sphi 0, %s303
      %s325 = sphi 0, %s327
      %s328 = sphi 0, %s325
      %s329 = sphi 0, %s328
      %s345 = sphi 0, %s329
      %s351 = sphi 0, %s353
      %s354 = sphi 0, %s351
      %s355 = sphi 0, %s354
      %s371 = sphi 0, %s355
      %s377 = sphi 0, %s379
      %s380 = sphi 0, %s377
      %s381 = sphi 0, %s380
      %s397 = sphi 0, %s381
    $region4: #{tpu_custom_call.1} parent=1 // loop_header_branch
      %25 = sbr.rel (%p23) target = $region8
    $region5: #{tpu_custom_call.1} parent=1 // loop_body
      %s27 = ssub.s32 %s22, 1
      %s28 = ssub.s32 %s22, 2
      %s35 = sadd.s32 1, %s30
      %p36 = scmp.ge.s32.totalorder %s35, 2
      %s37 = scalar_select %p36, 0, %s35
      %s38 = sadd.s32 1, %s29
      %s39 = scalar_select %p36, %s38, %s29
      %p40 = scmp.ge.s32.totalorder %s39, 2
      %s41 = scalar_select %p40, 0, %s39
      %s42 = ssub.s32 %s29, %s41
      %p43 = scmp.eq.s32.totalorder %s42, 0
      %s45 = sadd.s32 %s44, 1
      %s46 = scalar_select %p43, %s44, %s45
      %p49 = pneg %p43
      %p50 = scmp.eq.s32.totalorder %s22, 3
      %p51 = por %p49, %p50
      %p52 = scmp.ne.s32.totalorder %s44, %s47
      %p53 = scmp.eq.s32.totalorder %s22, 0
      %p54 = por %p52, %p53
      %p55 = scmp.ne.s32.totalorder %s44, %s47
      %p56 = scmp.eq.s32.totalorder %s27, 3
      %p57 = por %p55, %p56
      %p58 = scmp.ne.s32.totalorder %s47, %s48
      %p59 = scmp.eq.s32.totalorder %s27, 0
      %p60 = por %p58, %p59
      %p61 = scmp.ne.s32.totalorder %s47, %s48
      %p62 = scmp.eq.s32.totalorder %s28, 3
      %p63 = por %p61, %p62
      %p65 = scmp.ne.s32.totalorder %s48, %s64
      %p66 = scmp.eq.s32.totalorder %s28, 0
      %p67 = por %p65, %p66
      %s69 = sadd.s32 %s68, 1
      %p72 = scmp.eq.s32.totalorder %s22, 3
      %p73 = scmp.ne.s32.totalorder %s68, %s70
      %p74 = scmp.eq.s32.totalorder %s22, 0
      %p75 = por %p73, %p74
      %p76 = scmp.ne.s32.totalorder %s68, %s70
      %p77 = scmp.eq.s32.totalorder %s27, 3
      %p78 = por %p76, %p77
      %p79 = scmp.ne.s32.totalorder %s70, %s71
      %p80 = scmp.eq.s32.totalorder %s27, 0
      %p81 = por %p79, %p80
      %p82 = scmp.ne.s32.totalorder %s70, %s71
      %p83 = scmp.eq.s32.totalorder %s28, 3
      %p84 = por %p82, %p83
      %p86 = scmp.ne.s32.totalorder %s71, %s85
      %p87 = scmp.eq.s32.totalorder %s28, 0
      %p88 = por %p86, %p87
      %s89 = ssub.s32 %s30, %s37
      %p90 = scmp.eq.s32.totalorder %s89, 0
      %s92 = sadd.s32 %s91, 1
      %s93 = scalar_select %p90, %s91, %s92
      %p96 = pneg %p90
      %p97 = scmp.eq.s32.totalorder %s22, 3
      %p98 = por %p96, %p97
      %p99 = scmp.ne.s32.totalorder %s91, %s94
      %p100 = scmp.eq.s32.totalorder %s22, 0
      %p101 = por %p99, %p100
      %p102 = scmp.ne.s32.totalorder %s91, %s94
      %p103 = scmp.eq.s32.totalorder %s27, 3
      %p104 = por %p102, %p103
      %p105 = scmp.ne.s32.totalorder %s94, %s95
      %p106 = scmp.eq.s32.totalorder %s27, 0
      %p107 = por %p105, %p106
      %p108 = scmp.ne.s32.totalorder %s94, %s95
      %p109 = scmp.eq.s32.totalorder %s28, 3
      %p110 = por %p108, %p109
      %p112 = scmp.ne.s32.totalorder %s95, %s111
      %p113 = scmp.eq.s32.totalorder %s28, 0
      %p114 = por %p112, %p113
      %s115 = ssub.s32 %s30, %s37
      %p116 = scmp.eq.s32.totalorder %s115, 0
      %s118 = sadd.s32 %s117, 1
      %s119 = scalar_select %p116, %s117, %s118
      %p122 = pneg %p116
      %p123 = scmp.eq.s32.totalorder %s22, 3
      %p124 = por %p122, %p123
      %p125 = scmp.ne.s32.totalorder %s117, %s120
      %p126 = scmp.eq.s32.totalorder %s22, 0
      %p127 = por %p125, %p126
      %p128 = scmp.ne.s32.totalorder %s117, %s120
      %p129 = scmp.eq.s32.totalorder %s27, 3
      %p130 = por %p128, %p129
      %p131 = scmp.ne.s32.totalorder %s120, %s121
      %p132 = scmp.eq.s32.totalorder %s27, 0
      %p133 = por %p131, %p132
      %p134 = scmp.ne.s32.totalorder %s120, %s121
      %p135 = scmp.eq.s32.totalorder %s28, 3
      %p136 = por %p134, %p135
      %p138 = scmp.ne.s32.totalorder %s121, %s137
      %p139 = scmp.eq.s32.totalorder %s28, 0
      %p140 = por %p138, %p139
      %s141 = ssub.s32 %s30, %s37
      %p142 = scmp.eq.s32.totalorder %s141, 0
      %s144 = sadd.s32 %s143, 1
      %s145 = scalar_select %p142, %s143, %s144
      %p148 = pneg %p142
      %p149 = scmp.eq.s32.totalorder %s22, 3
      %p150 = por %p148, %p149
      %p151 = scmp.ne.s32.totalorder %s143, %s146
      %p152 = scmp.eq.s32.totalorder %s22, 0
      %p153 = por %p151, %p152
      %p154 = scmp.ne.s32.totalorder %s143, %s146
      %p155 = scmp.eq.s32.totalorder %s27, 3
      %p156 = por %p154, %p155
      %p157 = scmp.ne.s32.totalorder %s146, %s147
      %p158 = scmp.eq.s32.totalorder %s27, 0
      %p159 = por %p157, %p158
      %p160 = scmp.ne.s32.totalorder %s146, %s147
      %p161 = scmp.eq.s32.totalorder %s28, 3
      %p162 = por %p160, %p161
      %p164 = scmp.ne.s32.totalorder %s147, %s163
      %p165 = scmp.eq.s32.totalorder %s28, 0
      %p166 = por %p164, %p165
      %s167 = ssub.s32 %s30, %s37
      %p168 = scmp.eq.s32.totalorder %s167, 0
      %s170 = sadd.s32 %s169, 1
      %s171 = scalar_select %p168, %s169, %s170
      %p174 = pneg %p168
      %p175 = scmp.eq.s32.totalorder %s22, 3
      %p176 = por %p174, %p175
      %p177 = scmp.ne.s32.totalorder %s169, %s172
      %p178 = scmp.eq.s32.totalorder %s22, 0
      %p179 = por %p177, %p178
      %p180 = scmp.ne.s32.totalorder %s169, %s172
      %p181 = scmp.eq.s32.totalorder %s27, 3
      %p182 = por %p180, %p181
      %p183 = scmp.ne.s32.totalorder %s172, %s173
      %p184 = scmp.eq.s32.totalorder %s27, 0
      %p185 = por %p183, %p184
      %p186 = scmp.ne.s32.totalorder %s172, %s173
      %p187 = scmp.eq.s32.totalorder %s28, 3
      %p188 = por %p186, %p187
      %p190 = scmp.ne.s32.totalorder %s173, %s189
      %p191 = scmp.eq.s32.totalorder %s28, 0
      %p192 = por %p190, %p191
      %s193 = ssub.s32 %s30, %s37
      %p194 = scmp.eq.s32.totalorder %s193, 0
      %s196 = sadd.s32 %s195, 1
      %s197 = scalar_select %p194, %s195, %s196
      %p200 = pneg %p194
      %p201 = scmp.eq.s32.totalorder %s22, 3
      %p202 = por %p200, %p201
      %p203 = scmp.ne.s32.totalorder %s195, %s198
      %p204 = scmp.eq.s32.totalorder %s22, 0
      %p205 = por %p203, %p204
      %p206 = scmp.ne.s32.totalorder %s195, %s198
      %p207 = scmp.eq.s32.totalorder %s27, 3
      %p208 = por %p206, %p207
      %p209 = scmp.ne.s32.totalorder %s198, %s199
      %p210 = scmp.eq.s32.totalorder %s27, 0
      %p211 = por %p209, %p210
      %p212 = scmp.ne.s32.totalorder %s198, %s199
      %p213 = scmp.eq.s32.totalorder %s28, 3
      %p214 = por %p212, %p213
      %p216 = scmp.ne.s32.totalorder %s199, %s215
      %p217 = scmp.eq.s32.totalorder %s28, 0
      %p218 = por %p216, %p217
      %s219 = ssub.s32 %s30, %s37
      %p220 = scmp.eq.s32.totalorder %s219, 0
      %s222 = sadd.s32 %s221, 1
      %s223 = scalar_select %p220, %s221, %s222
      %p226 = pneg %p220
      %p227 = scmp.eq.s32.totalorder %s22, 3
      %p228 = por %p226, %p227
      %p229 = scmp.ne.s32.totalorder %s221, %s224
      %p230 = scmp.eq.s32.totalorder %s22, 0
      %p231 = por %p229, %p230
      %p232 = scmp.ne.s32.totalorder %s221, %s224
      %p233 = scmp.eq.s32.totalorder %s27, 3
      %p234 = por %p232, %p233
      %p235 = scmp.ne.s32.totalorder %s224, %s225
      %p236 = scmp.eq.s32.totalorder %s27, 0
      %p237 = por %p235, %p236
      %p238 = scmp.ne.s32.totalorder %s224, %s225
      %p239 = scmp.eq.s32.totalorder %s28, 3
      %p240 = por %p238, %p239
      %p242 = scmp.ne.s32.totalorder %s225, %s241
      %p243 = scmp.eq.s32.totalorder %s28, 0
      %p244 = por %p242, %p243
      %s245 = ssub.s32 %s30, %s37
      %p246 = scmp.eq.s32.totalorder %s245, 0
      %s248 = sadd.s32 %s247, 1
      %s249 = scalar_select %p246, %s247, %s248
      %p252 = pneg %p246
      %p253 = scmp.eq.s32.totalorder %s22, 3
      %p254 = por %p252, %p253
      %p255 = scmp.ne.s32.totalorder %s247, %s250
      %p256 = scmp.eq.s32.totalorder %s22, 0
      %p257 = por %p255, %p256
      %p258 = scmp.ne.s32.totalorder %s247, %s250
      %p259 = scmp.eq.s32.totalorder %s27, 3
      %p260 = por %p258, %p259
      %p261 = scmp.ne.s32.totalorder %s250, %s251
      %p262 = scmp.eq.s32.totalorder %s27, 0
      %p263 = por %p261, %p262
      %p264 = scmp.ne.s32.totalorder %s250, %s251
      %p265 = scmp.eq.s32.totalorder %s28, 3
      %p266 = por %p264, %p265
      %p268 = scmp.ne.s32.totalorder %s251, %s267
      %p269 = scmp.eq.s32.totalorder %s28, 0
      %p270 = por %p268, %p269
      %s271 = ssub.s32 %s30, %s37
      %p272 = scmp.eq.s32.totalorder %s271, 0
      %s274 = sadd.s32 %s273, 1
      %s275 = scalar_select %p272, %s273, %s274
      %p278 = pneg %p272
      %p279 = scmp.eq.s32.totalorder %s22, 3
      %p280 = por %p278, %p279
      %p281 = scmp.ne.s32.totalorder %s273, %s276
      %p282 = scmp.eq.s32.totalorder %s22, 0
      %p283 = por %p281, %p282
      %p284 = scmp.ne.s32.totalorder %s273, %s276
      %p285 = scmp.eq.s32.totalorder %s27, 3
      %p286 = por %p284, %p285
      %p287 = scmp.ne.s32.totalorder %s276, %s277
      %p288 = scmp.eq.s32.totalorder %s27, 0
      %p289 = por %p287, %p288
      %p290 = scmp.ne.s32.totalorder %s276, %s277
      %p291 = scmp.eq.s32.totalorder %s28, 3
      %p292 = por %p290, %p291
      %p294 = scmp.ne.s32.totalorder %s277, %s293
      %p295 = scmp.eq.s32.totalorder %s28, 0
      %p296 = por %p294, %p295
      %s297 = ssub.s32 %s30, %s37
      %p298 = scmp.eq.s32.totalorder %s297, 0
      %s300 = sadd.s32 %s299, 1
      %s301 = scalar_select %p298, %s299, %s300
      %p304 = pneg %p298
      %p305 = scmp.eq.s32.totalorder %s22, 3
      %p306 = por %p304, %p305
      %p307 = scmp.ne.s32.totalorder %s299, %s302
      %p308 = scmp.eq.s32.totalorder %s22, 0
      %p309 = por %p307, %p308
      %p310 = scmp.ne.s32.totalorder %s299, %s302
      %p311 = scmp.eq.s32.totalorder %s27, 3
      %p312 = por %p310, %p311
      %p313 = scmp.ne.s32.totalorder %s302, %s303
      %p314 = scmp.eq.s32.totalorder %s27, 0
      %p315 = por %p313, %p314
      %p316 = scmp.ne.s32.totalorder %s302, %s303
      %p317 = scmp.eq.s32.totalorder %s28, 3
      %p318 = por %p316, %p317
      %p320 = scmp.ne.s32.totalorder %s303, %s319
      %p321 = scmp.eq.s32.totalorder %s28, 0
      %p322 = por %p320, %p321
      %s323 = ssub.s32 %s30, %s37
      %p324 = scmp.eq.s32.totalorder %s323, 0
      %s326 = sadd.s32 %s325, 1
      %s327 = scalar_select %p324, %s325, %s326
      %p330 = pneg %p324
      %p331 = scmp.eq.s32.totalorder %s22, 3
      %p332 = por %p330, %p331
      %p333 = scmp.ne.s32.totalorder %s325, %s328
      %p334 = scmp.eq.s32.totalorder %s22, 0
      %p335 = por %p333, %p334
      %p336 = scmp.ne.s32.totalorder %s325, %s328
      %p337 = scmp.eq.s32.totalorder %s27, 3
      %p338 = por %p336, %p337
      %p339 = scmp.ne.s32.totalorder %s328, %s329
      %p340 = scmp.eq.s32.totalorder %s27, 0
      %p341 = por %p339, %p340
      %p342 = scmp.ne.s32.totalorder %s328, %s329
      %p343 = scmp.eq.s32.totalorder %s28, 3
      %p344 = por %p342, %p343
      %p346 = scmp.ne.s32.totalorder %s329, %s345
      %p347 = scmp.eq.s32.totalorder %s28, 0
      %p348 = por %p346, %p347
      %s349 = ssub.s32 %s30, %s37
      %p350 = scmp.eq.s32.totalorder %s349, 0
      %s352 = sadd.s32 %s351, 1
      %s353 = scalar_select %p350, %s351, %s352
      %p356 = pneg %p350
      %p357 = scmp.eq.s32.totalorder %s22, 3
      %p358 = por %p356, %p357
      %p359 = scmp.ne.s32.totalorder %s351, %s354
      %p360 = scmp.eq.s32.totalorder %s22, 0
      %p361 = por %p359, %p360
      %p362 = scmp.ne.s32.totalorder %s351, %s354
      %p363 = scmp.eq.s32.totalorder %s27, 3
      %p364 = por %p362, %p363
      %p365 = scmp.ne.s32.totalorder %s354, %s355
      %p366 = scmp.eq.s32.totalorder %s27, 0
      %p367 = por %p365, %p366
      %p368 = scmp.ne.s32.totalorder %s354, %s355
      %p369 = scmp.eq.s32.totalorder %s28, 3
      %p370 = por %p368, %p369
      %p372 = scmp.ne.s32.totalorder %s355, %s371
      %p373 = scmp.eq.s32.totalorder %s28, 0
      %p374 = por %p372, %p373
      %s375 = ssub.s32 %s29, %s41
      %p376 = scmp.eq.s32.totalorder %s375, 0
      %s378 = sadd.s32 %s377, 1
      %s379 = scalar_select %p376, %s377, %s378
      %p382 = pneg %p376
      %p383 = scmp.eq.s32.totalorder %s22, 3
      %p384 = por %p382, %p383
      %p385 = scmp.ne.s32.totalorder %s377, %s380
      %p386 = scmp.eq.s32.totalorder %s22, 0
      %p387 = por %p385, %p386
      %p388 = scmp.ne.s32.totalorder %s377, %s380
      %p389 = scmp.eq.s32.totalorder %s27, 3
      %p390 = por %p388, %p389
      %p391 = scmp.ne.s32.totalorder %s380, %s381
      %p392 = scmp.eq.s32.totalorder %s27, 0
      %p393 = por %p391, %p392
      %p394 = scmp.ne.s32.totalorder %s380, %s381
      %p395 = scmp.eq.s32.totalorder %s28, 3
      %p396 = por %p394, %p395
      %p398 = scmp.ne.s32.totalorder %s381, %s397
      %p399 = scmp.eq.s32.totalorder %s28, 0
      %p400 = por %p398, %p399
      %p401 = scmp.le.s32.totalorder 1, %s22
      %p402 = scmp.lt.s32.totalorder %s22, 5
      %p403 = pnand %p401, %p402
      %p404 = pneg %p403
      // Predicated region
      $region9: #{tpu_custom_call.1} parent=5 // pred_check
        _
      $region10: #{tpu_custom_call.1} parent=5 // pred_check_branch
        %406 = sbr.rel (%p403) target = $region12
      $region11: #{tpu_custom_call.1} parent=5 // pred_region
        %s407 = ssub.s32 %s22, 1
        // Predicated region
        $region13: #{tpu_custom_call.1} parent=11 // pred_check
          %p408 = pneg %p81
        $region14: #{tpu_custom_call.1} parent=11 // pred_check_branch
          %410 = sbr.rel (%p408) target = $region16
        $region15: #{tpu_custom_call.1} parent=11 // pred_region
          _
        $region16: #{tpu_custom_call.1} parent=11 // pred_fallthru
          _
      $region12: #{tpu_custom_call.1} parent=5 // pred_fallthru
        _
      %p411 = scmp.lt.s32.totalorder %s22, 4
      // Predicated region
      $region17: #{tpu_custom_call.1} parent=5 // pred_check
        %p412 = pneg %p411
      $region18: #{tpu_custom_call.1} parent=5 // pred_check_branch
        %414 = sbr.rel (%p412) target = $region20
      $region19: #{tpu_custom_call.1} parent=5 // pred_region
        // Predicated region
        $region21: #{tpu_custom_call.1} parent=19 // pred_check
          %p415 = pneg %p54
        $region22: #{tpu_custom_call.1} parent=19 // pred_check_branch
          %417 = sbr.rel (%p415) target = $region24
        $region23: #{tpu_custom_call.1} parent=19 // pred_region
          %p418 = scmp.lt.s32.totalorder %s29, 1
          %s419 = scalar_select %p418, %s29, 1
          %s420 = smul.addr %s419, 8
          %s421 = scalar_lea.vmem %s0, %s420
        $region24: #{tpu_custom_call.1} parent=19 // pred_fallthru
          _
        // Predicated region
        $region25: #{tpu_custom_call.1} parent=19 // pred_check
          %p422 = pneg %p101
        $region26: #{tpu_custom_call.1} parent=19 // pred_check_branch
          %424 = sbr.rel (%p422) target = $region28
        $region27: #{tpu_custom_call.1} parent=19 // pred_region
          %p425 = scmp.lt.s32.totalorder %s30, 1
          %s426 = scalar_select %p425, %s30, 1
          %s427 = scalar_lea.vmem %s2, %s426
        $region28: #{tpu_custom_call.1} parent=19 // pred_fallthru
          _
        // Predicated region
        $region29: #{tpu_custom_call.1} parent=19 // pred_check
          %p428 = pneg %p127
        $region30: #{tpu_custom_call.1} parent=19 // pred_check_branch
          %430 = sbr.rel (%p428) target = $region32
        $region31: #{tpu_custom_call.1} parent=19 // pred_region
          %p431 = scmp.lt.s32.totalorder %s30, 1
          %s432 = scalar_select %p431, %s30, 1
          %s433 = scalar_lea.vmem %s3, %s432
        $region32: #{tpu_custom_call.1} parent=19 // pred_fallthru
          _
        // Predicated region
        $region33: #{tpu_custom_call.1} parent=19 // pred_check
          %p434 = pneg %p153
        $region34: #{tpu_custom_call.1} parent=19 // pred_check_branch
          %436 = sbr.rel (%p434) target = $region36
        $region35: #{tpu_custom_call.1} parent=19 // pred_region
          %p437 = scmp.lt.s32.totalorder %s30, 1
          %s438 = scalar_select %p437, %s30, 1
          %s439 = smul.addr %s438, 4
          %s440 = smul.addr %s439, 4
          %s441 = scalar_lea.vmem %s4, %s440
        $region36: #{tpu_custom_call.1} parent=19 // pred_fallthru
          _
        // Predicated region
        $region37: #{tpu_custom_call.1} parent=19 // pred_check
          %p442 = pneg %p179
        $region38: #{tpu_custom_call.1} parent=19 // pred_check_branch
          %444 = sbr.rel (%p442) target = $region40
        $region39: #{tpu_custom_call.1} parent=19 // pred_region
          %p445 = scmp.lt.s32.totalorder %s30, 1
          %s446 = scalar_select %p445, %s30, 1
          %s447 = smul.addr %s446, 4
          %s448 = smul.addr %s447, 4
          %s449 = scalar_lea.vmem %s5, %s448
        $region40: #{tpu_custom_call.1} parent=19 // pred_fallthru
          _
        // Predicated region
        $region41: #{tpu_custom_call.1} parent=19 // pred_check
          %p450 = pneg %p205
        $region42: #{tpu_custom_call.1} parent=19 // pred_check_branch
          %452 = sbr.rel (%p450) target = $region44
        $region43: #{tpu_custom_call.1} parent=19 // pred_region
          %p453 = scmp.lt.s32.totalorder %s30, 1
          %s454 = scalar_select %p453, %s30, 1
          %s455 = scalar_lea.vmem %s6, %s454
        $region44: #{tpu_custom_call.1} parent=19 // pred_fallthru
          _
        // Predicated region
        $region45: #{tpu_custom_call.1} parent=19 // pred_check
          %p456 = pneg %p231
        $region46: #{tpu_custom_call.1} parent=19 // pred_check_branch
          %458 = sbr.rel (%p456) target = $region48
        $region47: #{tpu_custom_call.1} parent=19 // pred_region
          %p459 = scmp.lt.s32.totalorder %s30, 1
          %s460 = scalar_select %p459, %s30, 1
          %s461 = scalar_lea.vmem %s7, %s460
        $region48: #{tpu_custom_call.1} parent=19 // pred_fallthru
          _
        // Predicated region
        $region49: #{tpu_custom_call.1} parent=19 // pred_check
          %p462 = pneg %p257
        $region50: #{tpu_custom_call.1} parent=19 // pred_check_branch
          %464 = sbr.rel (%p462) target = $region52
        $region51: #{tpu_custom_call.1} parent=19 // pred_region
          %p465 = scmp.lt.s32.totalorder %s30, 1
          %s466 = scalar_select %p465, %s30, 1
          %s467 = scalar_lea.vmem %s8, %s466
        $region52: #{tpu_custom_call.1} parent=19 // pred_fallthru
          _
        // Predicated region
        $region53: #{tpu_custom_call.1} parent=19 // pred_check
          %p468 = pneg %p283
        $region54: #{tpu_custom_call.1} parent=19 // pred_check_branch
          %470 = sbr.rel (%p468) target = $region56
        $region55: #{tpu_custom_call.1} parent=19 // pred_region
          %p471 = scmp.lt.s32.totalorder %s30, 1
          %s472 = scalar_select %p471, %s30, 1
          %s473 = smul.addr %s472, 4
          %s474 = smul.addr %s473, 4
          %s475 = scalar_lea.vmem %s9, %s474
        $region56: #{tpu_custom_call.1} parent=19 // pred_fallthru
          _
        // Predicated region
        $region57: #{tpu_custom_call.1} parent=19 // pred_check
          %p476 = pneg %p309
        $region58: #{tpu_custom_call.1} parent=19 // pred_check_branch
          %478 = sbr.rel (%p476) target = $region60
        $region59: #{tpu_custom_call.1} parent=19 // pred_region
          %p479 = scmp.lt.s32.totalorder %s30, 1
          %s480 = scalar_select %p479, %s30, 1
          %s481 = scalar_lea.vmem %s10, %s480
        $region60: #{tpu_custom_call.1} parent=19 // pred_fallthru
          _
        // Predicated region
        $region61: #{tpu_custom_call.1} parent=19 // pred_check
          %p482 = pneg %p335
        $region62: #{tpu_custom_call.1} parent=19 // pred_check_branch
          %484 = sbr.rel (%p482) target = $region64
        $region63: #{tpu_custom_call.1} parent=19 // pred_region
          %p485 = scmp.lt.s32.totalorder %s30, 1
          %s486 = scalar_select %p485, %s30, 1
          %s487 = smul.addr %s486, 16
          %s488 = smul.addr %s487, 4
          %s489 = scalar_lea.vmem %s11, %s488
        $region64: #{tpu_custom_call.1} parent=19 // pred_fallthru
          _
        // Predicated region
        $region65: #{tpu_custom_call.1} parent=19 // pred_check
          %p490 = pneg %p361
        $region66: #{tpu_custom_call.1} parent=19 // pred_check_branch
          %492 = sbr.rel (%p490) target = $region68
        $region67: #{tpu_custom_call.1} parent=19 // pred_region
          %p493 = scmp.lt.s32.totalorder %s30, 1
          %s494 = scalar_select %p493, %s30, 1
          %s495 = scalar_lea.vmem %s12, %s494
        $region68: #{tpu_custom_call.1} parent=19 // pred_fallthru
          _
      $region20: #{tpu_custom_call.1} parent=5 // pred_fallthru
        _
      %p496 = scmp.le.s32.totalorder 1, %s22
      %p497 = scmp.lt.s32.totalorder %s22, 5
      %p498 = pnand %p496, %p497
      %p499 = pneg %p498
      // Predicated region
      $region69: #{tpu_custom_call.1} parent=5 // pred_check
        _
      $region70: #{tpu_custom_call.1} parent=5 // pred_check_branch
        %501 = sbr.rel (%p498) target = $region72
      $region71: #{tpu_custom_call.1} parent=5 // pred_region
        %s502 = ssub.s32 %s22, 1
        %p503 = scmp.lt.s32.totalorder %s31, 1
        %s504 = scalar_select %p503, %s31, 1
        %s505 = smul.addr %s504, 8
        %s506 = scalar_lea.vmem %s0, %s505
        %p507 = pneg %p60
        %p508 = pneg %p57
        %p509 = pneg %p81
        %p510 = pneg %p78
        %p511 = scmp.lt.s32.totalorder %s32, 1
        %s512 = scalar_select %p511, %s32, 1
        %s513 = scalar_lea.vmem %s2, %s512
        %p514 = pneg %p107
        %p515 = pneg %p104
        %p516 = scmp.lt.s32.totalorder %s32, 1
        %s517 = scalar_select %p516, %s32, 1
        %s518 = scalar_lea.vmem %s3, %s517
        %p519 = pneg %p133
        %p520 = pneg %p130
        %p521 = scmp.lt.s32.totalorder %s32, 1
        %s522 = scalar_select %p521, %s32, 1
        %s523 = smul.addr %s522, 4
        %s524 = smul.addr %s523, 4
        %s525 = scalar_lea.vmem %s4, %s524
        %p526 = pneg %p159
        %p527 = pneg %p156
        %p528 = scmp.lt.s32.totalorder %s32, 1
        %s529 = scalar_select %p528, %s32, 1
        %s530 = smul.addr %s529, 4
        %s531 = smul.addr %s530, 4
        %s532 = scalar_lea.vmem %s5, %s531
        %p533 = pneg %p185
        %p534 = pneg %p182
        %p535 = scmp.lt.s32.totalorder %s32, 1
        %s536 = scalar_select %p535, %s32, 1
        %s537 = scalar_lea.vmem %s6, %s536
        %p538 = pneg %p211
        %p539 = pneg %p208
        %p540 = scmp.lt.s32.totalorder %s32, 1
        %s541 = scalar_select %p540, %s32, 1
        %s542 = scalar_lea.vmem %s7, %s541
        %p543 = pneg %p237
        %p544 = pneg %p234
        %p545 = scmp.lt.s32.totalorder %s32, 1
        %s546 = scalar_select %p545, %s32, 1
        %s547 = scalar_lea.vmem %s8, %s546
        %p548 = pneg %p263
        %p549 = pneg %p260
        %p550 = scmp.lt.s32.totalorder %s32, 1
        %s551 = scalar_select %p550, %s32, 1
        %s552 = smul.addr %s551, 4
        %s553 = smul.addr %s552, 4
        %s554 = scalar_lea.vmem %s9, %s553
        %p555 = pneg %p289
        %p556 = pneg %p286
        %p557 = scmp.lt.s32.totalorder %s32, 1
        %s558 = scalar_select %p557, %s32, 1
        %s559 = scalar_lea.vmem %s10, %s558
        %p560 = pneg %p315
        %p561 = pneg %p312
        %p562 = scmp.lt.s32.totalorder %s32, 1
        %s563 = scalar_select %p562, %s32, 1
        %s564 = smul.addr %s563, 16
        %s565 = smul.addr %s564, 4
        %s566 = scalar_lea.vmem %s11, %s565
        %p567 = pneg %p341
        %p568 = pneg %p338
        %p569 = scmp.lt.s32.totalorder %s32, 1
        %s570 = scalar_select %p569, %s32, 1
        %s571 = scalar_lea.vmem %s12, %s570
        %p572 = pneg %p367
        %p573 = pneg %p364
        %p574 = pneg %p393
        %p575 = pneg %p390
        %s576 = sand.u32 %s380, 1
        %s577 = scalar_lea.sflag [#allocation5], %s576
        %s578 = sand.u32 %s380, 1
        %s579 = smul.addr %s578, 4
        %s580 = scalar_lea.vmem [#allocation4], %s579
        %p581 = scmp.lt.s32.totalorder %s31, 1
        %s582 = scalar_select %p581, %s31, 1
        %s583 = smul.addr %s582, 8
        %s584 = scalar_lea.vmem %s0, %s583
        %p585 = scmp.lt.s32.totalorder %s32, 1
        %s586 = scalar_select %p585, %s32, 1
        %s587 = scalar_lea.vmem %s2, %s586
        %p588 = scmp.lt.s32.totalorder %s32, 1
        %s589 = scalar_select %p588, %s32, 1
        %s590 = scalar_lea.vmem %s3, %s589
        %p591 = scmp.lt.s32.totalorder %s32, 1
        %s592 = scalar_select %p591, %s32, 1
        %s593 = smul.addr %s592, 4
        %s594 = smul.addr %s593, 4
        %s595 = scalar_lea.vmem %s4, %s594
        %p596 = scmp.lt.s32.totalorder %s32, 1
        %s597 = scalar_select %p596, %s32, 1
        %s598 = smul.addr %s597, 4
        %s599 = smul.addr %s598, 4
        %s600 = scalar_lea.vmem %s5, %s599
        %p601 = scmp.lt.s32.totalorder %s32, 1
        %s602 = scalar_select %p601, %s32, 1
        %s603 = scalar_lea.vmem %s6, %s602
        %p604 = scmp.lt.s32.totalorder %s32, 1
        %s605 = scalar_select %p604, %s32, 1
        %s606 = scalar_lea.vmem %s7, %s605
        %p607 = scmp.lt.s32.totalorder %s32, 1
        %s608 = scalar_select %p607, %s32, 1
        %s609 = scalar_lea.vmem %s8, %s608
        %p610 = scmp.lt.s32.totalorder %s32, 1
        %s611 = scalar_select %p610, %s32, 1
        %s612 = smul.addr %s611, 4
        %s613 = smul.addr %s612, 4
        %s614 = scalar_lea.vmem %s9, %s613
        %p615 = scmp.lt.s32.totalorder %s32, 1
        %s616 = scalar_select %p615, %s32, 1
        %s617 = scalar_lea.vmem %s10, %s616
        %p618 = scmp.lt.s32.totalorder %s32, 1
        %s619 = scalar_select %p618, %s32, 1
        %s620 = smul.addr %s619, 16
        %s621 = smul.addr %s620, 4
        %s622 = scalar_lea.vmem %s11, %s621
        %p623 = scmp.lt.s32.totalorder %s32, 1
        %s624 = scalar_select %p623, %s32, 1
        %s625 = scalar_lea.vmem %s12, %s624
        %p627 = scmp.eq.s32.totalorder %s32, 0
        // Predicated region
        $region73: #{tpu_custom_call.1} parent=71 // pred_check
          %p628 = pneg %p627
        $region74: #{tpu_custom_call.1} parent=71 // pred_check_branch
          %630 = sbr.rel (%p628) target = $region76
        $region75: #{tpu_custom_call.1} parent=71 // pred_region
          %v631 = vld [vmem:[%s584] sm:$0xff]
          %vm632 = vcmask 261120
          %633 = vst.msk [vmem:[#allocation2] sm:$0xff] %vm632, %v631
        $region76: #{tpu_custom_call.1} parent=71 // pred_fallthru
          _
        %v634 = vld [vmem:[#allocation2] sm:$0xff]
        %v635 = vld [vmem:[%s1] sm:$0xf]
        %v636 = vunpack.c.l.bf16 %v635
        %v637 = vld [vmem:[%s587] sm:$0x1]
        %v638 = vld [vmem:[%s590] sm:$0x1]
        %vm639 = vcmask 261120
        %v640 = vsel %vm639, %v634, 0.0
        %641 = vadd.xlane.f32.xlu0 %v640
        %v642 = vpop.xlane.xlu0 %641
        %v643 = vrcp.pop 32.0
        %v644 = vmul.f32 %v642, %v643
        %v645 = vsub.f32 %v634, %v644
        %v646 = vmul.f32 %v645, %v645
        %v647 = vsel %vm639, %v646, 0.0
        %648 = vadd.xlane.f32.xlu0 %v647
        %v649 = vpop.xlane.xlu0 %648
        %v650 = vmul.f32 %v649, %v643
        %v651 = vadd.f32 %v650, 1e-05
        %v652 = vrsqrt.pop %v651
        %v653 = vmul.f32 %v645, %v652
        %v655 = vlaneseq
        %v656 = vshrl.u32 %v655, 7
        %v657 = vsub.s32 0, %v656
        %v658 = vrot.slane %v637, %v657
        %v660 = vmul.f32 %v653, %v658
        %v662 = vlaneseq
        %v663 = vshrl.u32 %v662, 7
        %v664 = vsub.s32 0, %v663
        %v665 = vrot.slane %v638, %v664
        %v667 = vadd.f32 %v660, %v665
        %v668 = vpack.c.bf16 %v667, %v667
        %v669 = vld [vmem:[%s595] sm:$0xf]
        %v670 = vld [vmem:[%s595 + $0x4] sm:$0xf]
        %v671 = vld [vmem:[%s595 + $0x8] sm:$0xf]
        %v672 = vld [vmem:[%s595 + $0xc] sm:$0xf]
        %v677 = vunpack.c.l.b16 %v669
        %v678 = vunpack.c.l.b16 %v670
        %v679 = vunpack.c.l.b16 %v671
        %v680 = vunpack.c.l.b16 %v672
        %v681 = vpack.c.b16 %v678, %v677
        %v682 = vpack.c.b16 %v680, %v679
        %v686 = vsel %vm639, %v668, 0
        %688 = vmatprep.subr.bf16.mxu0 0
        %689 = vmatpush1.bf16.msra.mxu0 %v681
        %690 = vmatprep.subr.bf16.mxu0 0
        %691 = vmatpush1.bf16.msra.mxu0 %v682
        %692 = vmatprep.subr.bf16.mxu0 0
        %693 = vmatpush1.bf16.msra.mxu0 0
        %694 = vmatprep.subr.bf16.mxu0 0
        %695 = vmatpush1.bf16.msra.mxu0 0
        %696 = vmatprep.subr.bf16.mxu0 0
        %697 = vmatpush1.bf16.msra.mxu0 0
        %698 = vmatprep.subr.bf16.mxu0 0
        %699 = vmatpush1.bf16.msra.mxu0 0
        %700 = vmatprep.subr.bf16.mxu0 0
        %701 = vmatpush1.bf16.msra.mxu0 0
        %702 = vmatprep.subr.bf16.mxu0 0
        %703 = vmatpush1.bf16.msra.mxu0 0
        %704 = vmatprep.subr.bf16.mxu0 0
        %705 = vmatpush1.bf16.msra.mxu0 0
        %706 = vmatprep.subr.bf16.mxu0 0
        %707 = vmatpush1.bf16.msra.mxu0 0
        %708 = vmatprep.subr.bf16.mxu0 0
        %709 = vmatpush1.bf16.msra.mxu0 0
        %710 = vmatprep.subr.bf16.mxu0 0
        %711 = vmatpush1.bf16.msra.mxu0 0
        %712 = vmatprep.subr.bf16.mxu0 0
        %713 = vmatpush1.bf16.msra.mxu0 0
        %714 = vmatprep.subr.bf16.mxu0 0
        %715 = vmatpush1.bf16.msra.mxu0 0
        %716 = vmatprep.subr.bf16.mxu0 0
        %717 = vmatpush1.bf16.msra.mxu0 0
        %718 = vmatprep.subr.bf16.mxu0 0
        %719 = vmatpush1.bf16.msra.mxu0 0
        %720 = vmatprep.mubr.bf16.mxu0 0
        %721 = vmatmul.mubr.bf16.gmra.mrb[0].mxu0 %v686
        %v722 = vpop.f32.mrb[0].mxu0
        %v723 = vadd.f32 0.0, %v722
        %v724 = vpop.f32.mrb[0].mxu0
        %v725 = vpop.f32.mrb[0].mxu0
        %v726 = vpop.f32.mrb[0].mxu0
        %727 = vdwg.mxu0
        %v728 = vpack.c.bf16 %v723, %v723
        %730 = vrot.lane.b32.xlu0 %v728, 96
        %v731 = vpop.permute.xlu0 %730
        %vm732 = vcmask 64512
        %v734 = vsel %vm732, %v728, 0
        %v737 = vsel %vm732, %v731, 0
        %739 = vmatprep.subr.bf16.mxu0 0
        %740 = vmatpush1.bf16.xpose.msra.mxu0 %v737
        %741 = vmatprep.subr.bf16.mxu0 0
        %742 = vmatpush1.bf16.xpose.msra.mxu0 0
        %743 = vmatprep.subr.bf16.mxu0 0
        %744 = vmatpush1.bf16.xpose.msra.mxu0 0
        %745 = vmatprep.subr.bf16.mxu0 0
        %746 = vmatpush1.bf16.xpose.msra.mxu0 0
        %747 = vmatprep.subr.bf16.mxu0 0
        %748 = vmatpush1.bf16.xpose.msra.mxu0 0
        %749 = vmatprep.subr.bf16.mxu0 0
        %750 = vmatpush1.bf16.xpose.msra.mxu0 0
        %751 = vmatprep.subr.bf16.mxu0 0
        %752 = vmatpush1.bf16.xpose.msra.mxu0 0
        %753 = vmatprep.subr.bf16.mxu0 0
        %754 = vmatpush1.bf16.xpose.msra.mxu0 0
        %755 = vmatprep.subr.bf16.mxu0 0
        %756 = vmatpush1.bf16.xpose.msra.mxu0 0
        %757 = vmatprep.subr.bf16.mxu0 0
        %758 = vmatpush1.bf16.xpose.msra.mxu0 0
        %759 = vmatprep.subr.bf16.mxu0 0
        %760 = vmatpush1.bf16.xpose.msra.mxu0 0
        %761 = vmatprep.subr.bf16.mxu0 0
        %762 = vmatpush1.bf16.xpose.msra.mxu0 0
        %763 = vmatprep.subr.bf16.mxu0 0
        %764 = vmatpush1.bf16.xpose.msra.mxu0 0
        %765 = vmatprep.subr.bf16.mxu0 0
        %766 = vmatpush1.bf16.xpose.msra.mxu0 0
        %767 = vmatprep.subr.bf16.mxu0 0
        %768 = vmatpush1.bf16.xpose.msra.mxu0 0
        %769 = vmatprep.subr.bf16.mxu0 0
        %770 = vmatpush1.bf16.xpose.msra.mxu0 0
        %771 = vmatprep.mubr.bf16.mxu0 0
        %772 = vmatmul.mubr.bf16.gmra.mrb[0].mxu0 %v734
        %v773 = vpop.f32.mrb[0].mxu0
        %v774 = vadd.f32 0.0, %v773
        %v775 = vpop.f32.mrb[0].mxu0
        %v776 = vpop.f32.mrb[0].mxu0
        %v777 = vpop.f32.mrb[0].mxu0
        %778 = vdwg.mxu0
        %v779 = vmul.f32 %v774, 0.17677669
        %v780 = vadd.f32 %v779, %v636
        %v781 = vsel %vm732, %v780, -inf
        %782 = vmax.xlane.f32.xlu0 %v781
        %v783 = vpop.xlane.xlu0 %782
        %v784 = vsub.f32 %v780, %v783
        %v785 = vmul.f32 %v784, 1.442695
        %v786 = vpow.pop %v785
        %v787 = vsel %vm732, %v786, 0.0
        %788 = vadd.xlane.f32.xlu0 %v787
        %v789 = vpop.xlane.xlu0 %788
        %v790 = vrcp.pop %v789
        %v791 = vmul.f32 %v786, %v790
        %v792 = vpack.c.bf16 %v791, %v791
        %793 = vrot.lane.b32.xlu0 %v728, 64
        %v794 = vpop.permute.xlu0 %793
        %v796 = vsel %vm732, %v792, 0
        %vm798 = vcmask 1043456
        %v800 = vsel %vm798, %v794, 0
        %802 = vmatprep.subr.bf16.mxu0 0
        %803 = vmatpush1.bf16.msra.mxu0 %v800
        %804 = vmatprep.subr.bf16.mxu0 0
        %805 = vmatpush1.bf16.msra.mxu0 0
        %806 = vmatprep.subr.bf16.mxu0 0
        %807 = vmatpush1.bf16.msra.mxu0 0
        %808 = vmatprep.subr.bf16.mxu0 0
        %809 = vmatpush1.bf16.msra.mxu0 0
        %810 = vmatprep.subr.bf16.mxu0 0
        %811 = vmatpush1.bf16.msra.mxu0 0
        %812 = vmatprep.subr.bf16.mxu0 0
        %813 = vmatpush1.bf16.msra.mxu0 0
        %814 = vmatprep.subr.bf16.mxu0 0
        %815 = vmatpush1.bf16.msra.mxu0 0
        %816 = vmatprep.subr.bf16.mxu0 0
        %817 = vmatpush1.bf16.msra.mxu0 0
        %818 = vmatprep.subr.bf16.mxu0 0
        %819 = vmatpush1.bf16.msra.mxu0 0
        %820 = vmatprep.subr.bf16.mxu0 0
        %821 = vmatpush1.bf16.msra.mxu0 0
        %822 = vmatprep.subr.bf16.mxu0 0
        %823 = vmatpush1.bf16.msra.mxu0 0
        %824 = vmatprep.subr.bf16.mxu0 0
        %825 = vmatpush1.bf16.msra.mxu0 0
        %826 = vmatprep.subr.bf16.mxu0 0
        %827 = vmatpush1.bf16.msra.mxu0 0
        %828 = vmatprep.subr.bf16.mxu0 0
        %829 = vmatpush1.bf16.msra.mxu0 0
        %830 = vmatprep.subr.bf16.mxu0 0
        %831 = vmatpush1.bf16.msra.mxu0 0
        %832 = vmatprep.subr.bf16.mxu0 0
        %833 = vmatpush1.bf16.msra.mxu0 0
        %834 = vmatprep.mubr.bf16.mxu0 0
        %835 = vmatmul.mubr.bf16.gmra.mrb[0].mxu0 %v796
        %v836 = vpop.f32.mrb[0].mxu0
        %v837 = vadd.f32 0.0, %v836
        %v838 = vpop.f32.mrb[0].mxu0
        %v839 = vpop.f32.mrb[0].mxu0
        %v840 = vpop.f32.mrb[0].mxu0
        %841 = vdwg.mxu0
        %v842 = vpack.c.bf16 %v837, %v837
        %vm843 = vcmask 60416
        %844 = vst.msk [vmem:[#allocation3] sm:$0xf] %vm843, %v842
        %845 = vrot.lane.b32.xlu0 %v728, 120
        %v846 = vpop.permute.xlu0 %845
        %847 = vrot.lane.b32.xlu0 %v728, 88
        %v848 = vpop.permute.xlu0 %847
        %v850 = vsel %vm732, %v846, 0
        %v853 = vsel %vm732, %v848, 0
        %855 = vmatprep.subr.bf16.mxu0 0
        %856 = vmatpush1.bf16.xpose.msra.mxu0 %v853
        %857 = vmatprep.subr.bf16.mxu0 0
        %858 = vmatpush1.bf16.xpose.msra.mxu0 0
        %859 = vmatprep.subr.bf16.mxu0 0
        %860 = vmatpush1.bf16.xpose.msra.mxu0 0
        %861 = vmatprep.subr.bf16.mxu0 0
        %862 = vmatpush1.bf16.xpose.msra.mxu0 0
        %863 = vmatprep.subr.bf16.mxu0 0
        %864 = vmatpush1.bf16.xpose.msra.mxu0 0
        %865 = vmatprep.subr.bf16.mxu0 0
        %866 = vmatpush1.bf16.xpose.msra.mxu0 0
        %867 = vmatprep.subr.bf16.mxu0 0
        %868 = vmatpush1.bf16.xpose.msra.mxu0 0
        %869 = vmatprep.subr.bf16.mxu0 0
        %870 = vmatpush1.bf16.xpose.msra.mxu0 0
        %871 = vmatprep.subr.bf16.mxu0 0
        %872 = vmatpush1.bf16.xpose.msra.mxu0 0
        %873 = vmatprep.subr.bf16.mxu0 0
        %874 = vmatpush1.bf16.xpose.msra.mxu0 0
        %875 = vmatprep.subr.bf16.mxu0 0
        %876 = vmatpush1.bf16.xpose.msra.mxu0 0
        %877 = vmatprep.subr.bf16.mxu0 0
        %878 = vmatpush1.bf16.xpose.msra.mxu0 0
        %879 = vmatprep.subr.bf16.mxu0 0
        %880 = vmatpush1.bf16.xpose.msra.mxu0 0
        %881 = vmatprep.subr.bf16.mxu0 0
        %882 = vmatpush1.bf16.xpose.msra.mxu0 0
        %883 = vmatprep.subr.bf16.mxu0 0
        %884 = vmatpush1.bf16.xpose.msra.mxu0 0
        %885 = vmatprep.subr.bf16.mxu0 0
        %886 = vmatpush1.bf16.xpose.msra.mxu0 0
        %887 = vmatprep.mubr.bf16.mxu0 0
        %888 = vmatmul.mubr.bf16.gmra.mrb[0].mxu0 %v850
        %v889 = vpop.f32.mrb[0].mxu0
        %v890 = vadd.f32 0.0, %v889
        %v891 = vpop.f32.mrb[0].mxu0
        %v892 = vpop.f32.mrb[0].mxu0
        %v893 = vpop.f32.mrb[0].mxu0
        %894 = vdwg.mxu0
        %v895 = vmul.f32 %v890, 0.17677669
        %v896 = vadd.f32 %v895, %v636
        %v897 = vsel %vm732, %v896, -inf
        %898 = vmax.xlane.f32.xlu0 %v897
        %v899 = vpop.xlane.xlu0 %898
        %v900 = vsub.f32 %v896, %v899
        %v901 = vmul.f32 %v900, 1.442695
        %v902 = vpow.pop %v901
        %v903 = vsel %vm732, %v902, 0.0
        %904 = vadd.xlane.f32.xlu0 %v903
        %v905 = vpop.xlane.xlu0 %904
        %v906 = vrcp.pop %v905
        %v907 = vmul.f32 %v902, %v906
        %v908 = vpack.c.bf16 %v907, %v907
        %909 = vrot.lane.b32.xlu0 %v728, 56
        %v910 = vpop.permute.xlu0 %909
        %v912 = vsel %vm732, %v908, 0
        %v915 = vsel %vm798, %v910, 0
        %917 = vmatprep.subr.bf16.mxu0 0
        %918 = vmatpush1.bf16.msra.mxu0 %v915
        %919 = vmatprep.subr.bf16.mxu0 0
        %920 = vmatpush1.bf16.msra.mxu0 0
        %921 = vmatprep.subr.bf16.mxu0 0
        %922 = vmatpush1.bf16.msra.mxu0 0
        %923 = vmatprep.subr.bf16.mxu0 0
        %924 = vmatpush1.bf16.msra.mxu0 0
        %925 = vmatprep.subr.bf16.mxu0 0
        %926 = vmatpush1.bf16.msra.mxu0 0
        %927 = vmatprep.subr.bf16.mxu0 0
        %928 = vmatpush1.bf16.msra.mxu0 0
        %929 = vmatprep.subr.bf16.mxu0 0
        %930 = vmatpush1.bf16.msra.mxu0 0
        %931 = vmatprep.subr.bf16.mxu0 0
        %932 = vmatpush1.bf16.msra.mxu0 0
        %933 = vmatprep.subr.bf16.mxu0 0
        %934 = vmatpush1.bf16.msra.mxu0 0
        %935 = vmatprep.subr.bf16.mxu0 0
        %936 = vmatpush1.bf16.msra.mxu0 0
        %937 = vmatprep.subr.bf16.mxu0 0
        %938 = vmatpush1.bf16.msra.mxu0 0
        %939 = vmatprep.subr.bf16.mxu0 0
        %940 = vmatpush1.bf16.msra.mxu0 0
        %941 = vmatprep.subr.bf16.mxu0 0
        %942 = vmatpush1.bf16.msra.mxu0 0
        %943 = vmatprep.subr.bf16.mxu0 0
        %944 = vmatpush1.bf16.msra.mxu0 0
        %945 = vmatprep.subr.bf16.mxu0 0
        %946 = vmatpush1.bf16.msra.mxu0 0
        %947 = vmatprep.subr.bf16.mxu0 0
        %948 = vmatpush1.bf16.msra.mxu0 0
        %949 = vmatprep.mubr.bf16.mxu0 0
        %950 = vmatmul.mubr.bf16.gmra.mrb[0].mxu0 %v912
        %v951 = vpop.f32.mrb[0].mxu0
        %v952 = vadd.f32 0.0, %v951
        %v953 = vpop.f32.mrb[0].mxu0
        %v954 = vpop.f32.mrb[0].mxu0
        %v955 = vpop.f32.mrb[0].mxu0
        %956 = vdwg.mxu0
        %v957 = vpack.c.bf16 %v952, %v952
        %v959 = vunpack.c.l.b16 %v957
        %v960 = vpack.c.b16 %v959, %v959
        %961 = vrot.lane.b32.xlu0 %v960, 8
        %v962 = vpop.permute.xlu0 %961
        %vm964 = vcmask 126016
        %965 = vst.msk [vmem:[#allocation3] sm:$0xf] %vm964, %v962
        %966 = vrot.lane.b32.xlu0 %v728, 112
        %v967 = vpop.permute.xlu0 %966
        %968 = vrot.lane.b32.xlu0 %v728, 80
        %v969 = vpop.permute.xlu0 %968
        %v971 = vsel %vm732, %v967, 0
        %v974 = vsel %vm732, %v969, 0
        %976 = vmatprep.subr.bf16.mxu0 0
        %977 = vmatpush1.bf16.xpose.msra.mxu0 %v974
        %978 = vmatprep.subr.bf16.mxu0 0
        %979 = vmatpush1.bf16.xpose.msra.mxu0 0
        %980 = vmatprep.subr.bf16.mxu0 0
        %981 = vmatpush1.bf16.xpose.msra.mxu0 0
        %982 = vmatprep.subr.bf16.mxu0 0
        %983 = vmatpush1.bf16.xpose.msra.mxu0 0
        %984 = vmatprep.subr.bf16.mxu0 0
        %985 = vmatpush1.bf16.xpose.msra.mxu0 0
        %986 = vmatprep.subr.bf16.mxu0 0
        %987 = vmatpush1.bf16.xpose.msra.mxu0 0
        %988 = vmatprep.subr.bf16.mxu0 0
        %989 = vmatpush1.bf16.xpose.msra.mxu0 0
        %990 = vmatprep.subr.bf16.mxu0 0
        %991 = vmatpush1.bf16.xpose.msra.mxu0 0
        %992 = vmatprep.subr.bf16.mxu0 0
        %993 = vmatpush1.bf16.xpose.msra.mxu0 0
        %994 = vmatprep.subr.bf16.mxu0 0
        %995 = vmatpush1.bf16.xpose.msra.mxu0 0
        %996 = vmatprep.subr.bf16.mxu0 0
        %997 = vmatpush1.bf16.xpose.msra.mxu0 0
        %998 = vmatprep.subr.bf16.mxu0 0
        %999 = vmatpush1.bf16.xpose.msra.mxu0 0
        %1000 = vmatprep.subr.bf16.mxu0 0
        %1001 = vmatpush1.bf16.xpose.msra.mxu0 0
        %1002 = vmatprep.subr.bf16.mxu0 0
        %1003 = vmatpush1.bf16.xpose.msra.mxu0 0
        %1004 = vmatprep.subr.bf16.mxu0 0
        %1005 = vmatpush1.bf16.xpose.msra.mxu0 0
        %1006 = vmatprep.subr.bf16.mxu0 0
        %1007 = vmatpush1.bf16.xpose.msra.mxu0 0
        %1008 = vmatprep.mubr.bf16.mxu0 0
        %1009 = vmatmul.mubr.bf16.gmra.mrb[0].mxu0 %v971
        %v1010 = vpop.f32.mrb[0].mxu0
        %v1011 = vadd.f32 0.0, %v1010
        %v1012 = vpop.f32.mrb[0].mxu0
        %v1013 = vpop.f32.mrb[0].mxu0
        %v1014 = vpop.f32.mrb[0].mxu0
        %1015 = vdwg.mxu0
        %v1016 = vmul.f32 %v1011, 0.17677669
        %v1017 = vadd.f32 %v1016, %v636
        %v1018 = vsel %vm732, %v1017, -inf
        %1019 = vmax.xlane.f32.xlu0 %v1018
        %v1020 = vpop.xlane.xlu0 %1019
        %v1021 = vsub.f32 %v1017, %v1020
        %v1022 = vmul.f32 %v1021, 1.442695
        %v1023 = vpow.pop %v1022
        %v1024 = vsel %vm732, %v1023, 0.0
        %1025 = vadd.xlane.f32.xlu0 %v1024
        %v1026 = vpop.xlane.xlu0 %1025
        %v1027 = vrcp.pop %v1026
        %v1028 = vmul.f32 %v1023, %v1027
        %v1029 = vpack.c.bf16 %v1028, %v1028
        %1030 = vrot.lane.b32.xlu0 %v728, 48
        %v1031 = vpop.permute.xlu0 %1030
        %v1033 = vsel %vm732, %v1029, 0
        %v1036 = vsel %vm798, %v1031, 0
        %1038 = vmatprep.subr.bf16.mxu0 0
        %1039 = vmatpush1.bf16.msra.mxu0 %v1036
        %1040 = vmatprep.subr.bf16.mxu0 0
        %1041 = vmatpush1.bf16.msra.mxu0 0
        %1042 = vmatprep.subr.bf16.mxu0 0
        %1043 = vmatpush1.bf16.msra.mxu0 0
        %1044 = vmatprep.subr.bf16.mxu0 0
        %1045 = vmatpush1.bf16.msra.mxu0 0
        %1046 = vmatprep.subr.bf16.mxu0 0
        %1047 = vmatpush1.bf16.msra.mxu0 0
        %1048 = vmatprep.subr.bf16.mxu0 0
        %1049 = vmatpush1.bf16.msra.mxu0 0
        %1050 = vmatprep.subr.bf16.mxu0 0
        %1051 = vmatpush1.bf16.msra.mxu0 0
        %1052 = vmatprep.subr.bf16.mxu0 0
        %1053 = vmatpush1.bf16.msra.mxu0 0
        %1054 = vmatprep.subr.bf16.mxu0 0
        %1055 = vmatpush1.bf16.msra.mxu0 0
        %1056 = vmatprep.subr.bf16.mxu0 0
        %1057 = vmatpush1.bf16.msra.mxu0 0
        %1058 = vmatprep.subr.bf16.mxu0 0
        %1059 = vmatpush1.bf16.msra.mxu0 0
        %1060 = vmatprep.subr.bf16.mxu0 0
        %1061 = vmatpush1.bf16.msra.mxu0 0
        %1062 = vmatprep.subr.bf16.mxu0 0
        %1063 = vmatpush1.bf16.msra.mxu0 0
        %1064 = vmatprep.subr.bf16.mxu0 0
        %1065 = vmatpush1.bf16.msra.mxu0 0
        %1066 = vmatprep.subr.bf16.mxu0 0
        %1067 = vmatpush1.bf16.msra.mxu0 0
        %1068 = vmatprep.subr.bf16.mxu0 0
        %1069 = vmatpush1.bf16.msra.mxu0 0
        %1070 = vmatprep.mubr.bf16.mxu0 0
        %1071 = vmatmul.mubr.bf16.gmra.mrb[0].mxu0 %v1033
        %v1072 = vpop.f32.mrb[0].mxu0
        %v1073 = vadd.f32 0.0, %v1072
        %v1074 = vpop.f32.mrb[0].mxu0
        %v1075 = vpop.f32.mrb[0].mxu0
        %v1076 = vpop.f32.mrb[0].mxu0
        %1077 = vdwg.mxu0
        %v1078 = vpack.c.bf16 %v1073, %v1073
        %v1080 = vunpack.c.l.b16 %v1078
        %v1081 = vpack.c.b16 %v1080, %v1080
        %1082 = vrot.lane.b32.xlu0 %v1081, 16
        %v1083 = vpop.permute.xlu0 %1082
        %vm1085 = vcmask 191616
        %1086 = vst.msk [vmem:[#allocation3] sm:$0xf] %vm1085, %v1083
        %1087 = vrot.lane.b32.xlu0 %v728, 104
        %v1088 = vpop.permute.xlu0 %1087
        %1089 = vrot.lane.b32.xlu0 %v728, 72
        %v1090 = vpop.permute.xlu0 %1089
        %v1092 = vsel %vm732, %v1088, 0
        %v1095 = vsel %vm732, %v1090, 0
        %1097 = vmatprep.subr.bf16.mxu0 0
        %1098 = vmatpush1.bf16.xpose.msra.mxu0 %v1095
        %1099 = vmatprep.subr.bf16.mxu0 0
        %1100 = vmatpush1.bf16.xpose.msra.mxu0 0
        %1101 = vmatprep.subr.bf16.mxu0 0
        %1102 = vmatpush1.bf16.xpose.msra.mxu0 0
        %1103 = vmatprep.subr.bf16.mxu0 0
        %1104 = vmatpush1.bf16.xpose.msra.mxu0 0
        %1105 = vmatprep.subr.bf16.mxu0 0
        %1106 = vmatpush1.bf16.xpose.msra.mxu0 0
        %1107 = vmatprep.subr.bf16.mxu0 0
        %1108 = vmatpush1.bf16.xpose.msra.mxu0 0
        %1109 = vmatprep.subr.bf16.mxu0 0
        %1110 = vmatpush1.bf16.xpose.msra.mxu0 0
        %1111 = vmatprep.subr.bf16.mxu0 0
        %1112 = vmatpush1.bf16.xpose.msra.mxu0 0
        %1113 = vmatprep.subr.bf16.mxu0 0
        %1114 = vmatpush1.bf16.xpose.msra.mxu0 0
        %1115 = vmatprep.subr.bf16.mxu0 0
        %1116 = vmatpush1.bf16.xpose.msra.mxu0 0
        %1117 = vmatprep.subr.bf16.mxu0 0
        %1118 = vmatpush1.bf16.xpose.msra.mxu0 0
        %1119 = vmatprep.subr.bf16.mxu0 0
        %1120 = vmatpush1.bf16.xpose.msra.mxu0 0
        %1121 = vmatprep.subr.bf16.mxu0 0
        %1122 = vmatpush1.bf16.xpose.msra.mxu0 0
        %1123 = vmatprep.subr.bf16.mxu0 0
        %1124 = vmatpush1.bf16.xpose.msra.mxu0 0
        %1125 = vmatprep.subr.bf16.mxu0 0
        %1126 = vmatpush1.bf16.xpose.msra.mxu0 0
        %1127 = vmatprep.subr.bf16.mxu0 0
        %1128 = vmatpush1.bf16.xpose.msra.mxu0 0
        %1129 = vmatprep.mubr.bf16.mxu0 0
        %1130 = vmatmul.mubr.bf16.gmra.mrb[0].mxu0 %v1092
        %v1131 = vpop.f32.mrb[0].mxu0
        %v1132 = vadd.f32 0.0, %v1131
        %v1133 = vpop.f32.mrb[0].mxu0
        %v1134 = vpop.f32.mrb[0].mxu0
        %v1135 = vpop.f32.mrb[0].mxu0
        %1136 = vdwg.mxu0
        %v1137 = vmul.f32 %v1132, 0.17677669
        %v1138 = vadd.f32 %v1137, %v636
        %v1139 = vsel %vm732, %v1138, -inf
        %1140 = vmax.xlane.f32.xlu0 %v1139
        %v1141 = vpop.xlane.xlu0 %1140
        %v1142 = vsub.f32 %v1138, %v1141
        %v1143 = vmul.f32 %v1142, 1.442695
        %v1144 = vpow.pop %v1143
        %v1145 = vsel %vm732, %v1144, 0.0
        %1146 = vadd.xlane.f32.xlu0 %v1145
        %v1147 = vpop.xlane.xlu0 %1146
        %v1148 = vrcp.pop %v1147
        %v1149 = vmul.f32 %v1144, %v1148
        %v1150 = vpack.c.bf16 %v1149, %v1149
        %1151 = vrot.lane.b32.xlu0 %v728, 40
        %v1152 = vpop.permute.xlu0 %1151
        %v1154 = vsel %vm732, %v1150, 0
        %v1157 = vsel %vm798, %v1152, 0
        %1159 = vmatprep.subr.bf16.mxu0 0
        %1160 = vmatpush1.bf16.msra.mxu0 %v1157
        %1161 = vmatprep.subr.bf16.mxu0 0
        %1162 = vmatpush1.bf16.msra.mxu0 0
        %1163 = vmatprep.subr.bf16.mxu0 0
        %1164 = vmatpush1.bf16.msra.mxu0 0
        %1165 = vmatprep.subr.bf16.mxu0 0
        %1166 = vmatpush1.bf16.msra.mxu0 0
        %1167 = vmatprep.subr.bf16.mxu0 0
        %1168 = vmatpush1.bf16.msra.mxu0 0
        %1169 = vmatprep.subr.bf16.mxu0 0
        %1170 = vmatpush1.bf16.msra.mxu0 0
        %1171 = vmatprep.subr.bf16.mxu0 0
        %1172 = vmatpush1.bf16.msra.mxu0 0
        %1173 = vmatprep.subr.bf16.mxu0 0
        %1174 = vmatpush1.bf16.msra.mxu0 0
        %1175 = vmatprep.subr.bf16.mxu0 0
        %1176 = vmatpush1.bf16.msra.mxu0 0
        %1177 = vmatprep.subr.bf16.mxu0 0
        %1178 = vmatpush1.bf16.msra.mxu0 0
        %1179 = vmatprep.subr.bf16.mxu0 0
        %1180 = vmatpush1.bf16.msra.mxu0 0
        %1181 = vmatprep.subr.bf16.mxu0 0
        %1182 = vmatpush1.bf16.msra.mxu0 0
        %1183 = vmatprep.subr.bf16.mxu0 0
        %1184 = vmatpush1.bf16.msra.mxu0 0
        %1185 = vmatprep.subr.bf16.mxu0 0
        %1186 = vmatpush1.bf16.msra.mxu0 0
        %1187 = vmatprep.subr.bf16.mxu0 0
        %1188 = vmatpush1.bf16.msra.mxu0 0
        %1189 = vmatprep.subr.bf16.mxu0 0
        %1190 = vmatpush1.bf16.msra.mxu0 0
        %1191 = vmatprep.mubr.bf16.mxu0 0
        %1192 = vmatmul.mubr.bf16.gmra.mrb[0].mxu0 %v1154
        %v1193 = vpop.f32.mrb[0].mxu0
        %v1194 = vadd.f32 0.0, %v1193
        %v1195 = vpop.f32.mrb[0].mxu0
        %v1196 = vpop.f32.mrb[0].mxu0
        %v1197 = vpop.f32.mrb[0].mxu0
        %1198 = vdwg.mxu0
        %v1199 = vpack.c.bf16 %v1194, %v1194
        %v1201 = vunpack.c.l.b16 %v1199
        %v1202 = vpack.c.b16 %v1201, %v1201
        %1203 = vrot.lane.b32.xlu0 %v1202, 24
        %v1204 = vpop.permute.xlu0 %1203
        %vm1206 = vcmask 257216
        %1207 = vst.msk [vmem:[#allocation3] sm:$0xf] %vm1206, %v1204
        %v1208 = vld [vmem:[#allocation3] sm:$0xf]
        %v1209 = vld [vmem:[%s600] sm:$0xf]
        %v1210 = vld [vmem:[%s600 + $0x4] sm:$0xf]
        %v1211 = vld [vmem:[%s600 + $0x8] sm:$0xf]
        %v1212 = vld [vmem:[%s600 + $0xc] sm:$0xf]
        %v1213 = vld [vmem:[%s603] sm:$0x1]
        %v1215 = vlaneseq
        %v1216 = vshrl.u32 %v1215, 7
        %v1217 = vsub.s32 0, %v1216
        %v1218 = vrot.slane %v1213, %v1217
        %v1224 = vunpack.c.l.b16 %v1209
        %v1225 = vunpack.c.l.b16 %v1210
        %v1226 = vunpack.c.l.b16 %v1211
        %v1227 = vunpack.c.l.b16 %v1212
        %v1228 = vpack.c.b16 %v1225, %v1224
        %v1229 = vpack.c.b16 %v1227, %v1226
        %v1233 = vsel %vm639, %v1208, 0
        %1235 = vmatprep.subr.bf16.mxu0 0
        %1236 = vmatpush1.bf16.msra.mxu0 %v1228
        %1237 = vmatprep.subr.bf16.mxu0 0
        %1238 = vmatpush1.bf16.msra.mxu0 %v1229
        %1239 = vmatprep.subr.bf16.mxu0 0
        %1240 = vmatpush1.bf16.msra.mxu0 0
        %1241 = vmatprep.subr.bf16.mxu0 0
        %1242 = vmatpush1.bf16.msra.mxu0 0
        %1243 = vmatprep.subr.bf16.mxu0 0
        %1244 = vmatpush1.bf16.msra.mxu0 0
        %1245 = vmatprep.subr.bf16.mxu0 0
        %1246 = vmatpush1.bf16.msra.mxu0 0
        %1247 = vmatprep.subr.bf16.mxu0 0
        %1248 = vmatpush1.bf16.msra.mxu0 0
        %1249 = vmatprep.subr.bf16.mxu0 0
        %1250 = vmatpush1.bf16.msra.mxu0 0
        %1251 = vmatprep.subr.bf16.mxu0 0
        %1252 = vmatpush1.bf16.msra.mxu0 0
        %1253 = vmatprep.subr.bf16.mxu0 0
        %1254 = vmatpush1.bf16.msra.mxu0 0
        %1255 = vmatprep.subr.bf16.mxu0 0
        %1256 = vmatpush1.bf16.msra.mxu0 0
        %1257 = vmatprep.subr.bf16.mxu0 0
        %1258 = vmatpush1.bf16.msra.mxu0 0
        %1259 = vmatprep.subr.bf16.mxu0 0
        %1260 = vmatpush1.bf16.msra.mxu0 0
        %1261 = vmatprep.subr.bf16.mxu0 0
        %1262 = vmatpush1.bf16.msra.mxu0 0
        %1263 = vmatprep.subr.bf16.mxu0 0
        %1264 = vmatpush1.bf16.msra.mxu0 0
        %1265 = vmatprep.subr.bf16.mxu0 0
        %1266 = vmatpush1.bf16.msra.mxu0 0
        %1267 = vmatprep.mubr.bf16.mxu0 0
        %1268 = vmatmul.mubr.bf16.gmra.mrb[0].mxu0 %v1233
        %v1269 = vpop.f32.mrb[0].mxu0
        %v1270 = vadd.f32 %v1218, %v1269
        %v1271 = vpop.f32.mrb[0].mxu0
        %v1272 = vpop.f32.mrb[0].mxu0
        %v1273 = vpop.f32.mrb[0].mxu0
        %1274 = vdwg.mxu0
        %v1275 = vadd.f32 %v634, %v1270
        %v1276 = vld [vmem:[%s606] sm:$0x1]
        %v1277 = vld [vmem:[%s609] sm:$0x1]
        %v1278 = vsel %vm639, %v1275, 0.0
        %1279 = vadd.xlane.f32.xlu0 %v1278
        %v1280 = vpop.xlane.xlu0 %1279
        %v1281 = vmul.f32 %v1280, %v643
        %v1282 = vsub.f32 %v1275, %v1281
        %v1283 = vmul.f32 %v1282, %v1282
        %v1284 = vsel %vm639, %v1283, 0.0
        %1285 = vadd.xlane.f32.xlu0 %v1284
        %v1286 = vpop.xlane.xlu0 %1285
        %v1287 = vmul.f32 %v1286, %v643
        %v1288 = vadd.f32 %v1287, 1e-05
        %v1289 = vrsqrt.pop %v1288
        %v1290 = vmul.f32 %v1282, %v1289
        %v1292 = vlaneseq
        %v1293 = vshrl.u32 %v1292, 7
        %v1294 = vsub.s32 0, %v1293
        %v1295 = vrot.slane %v1276, %v1294
        %v1297 = vmul.f32 %v1290, %v1295
        %v1299 = vlaneseq
        %v1300 = vshrl.u32 %v1299, 7
        %v1301 = vsub.s32 0, %v1300
        %v1302 = vrot.slane %v1277, %v1301
        %v1304 = vadd.f32 %v1297, %v1302
        %v1305 = vpack.c.bf16 %v1304, %v1304
        %v1306 = vld [vmem:[%s614] sm:$0xf]
        %v1307 = vld [vmem:[%s614 + $0x4] sm:$0xf]
        %v1308 = vld [vmem:[%s614 + $0x8] sm:$0xf]
        %v1309 = vld [vmem:[%s614 + $0xc] sm:$0xf]
        %v1310 = vld [vmem:[%s617] sm:$0x1]
        %v1312 = vlaneseq
        %v1313 = vshrl.u32 %v1312, 7
        %v1314 = vsub.s32 0, %v1313
        %v1315 = vrot.slane %v1310, %v1314
        %v1321 = vunpack.c.l.b16 %v1306
        %v1322 = vunpack.c.l.b16 %v1307
        %v1323 = vunpack.c.l.b16 %v1308
        %v1324 = vunpack.c.l.b16 %v1309
        %v1325 = vpack.c.b16 %v1322, %v1321
        %v1326 = vpack.c.b16 %v1324, %v1323
        %v1330 = vsel %vm639, %v1305, 0
        %1332 = vmatprep.subr.bf16.mxu0 0
        %1333 = vmatpush1.bf16.msra.mxu0 %v1325
        %1334 = vmatprep.subr.bf16.mxu0 0
        %1335 = vmatpush1.bf16.msra.mxu0 %v1326
        %1336 = vmatprep.subr.bf16.mxu0 0
        %1337 = vmatpush1.bf16.msra.mxu0 0
        %1338 = vmatprep.subr.bf16.mxu0 0
        %1339 = vmatpush1.bf16.msra.mxu0 0
        %1340 = vmatprep.subr.bf16.mxu0 0
        %1341 = vmatpush1.bf16.msra.mxu0 0
        %1342 = vmatprep.subr.bf16.mxu0 0
        %1343 = vmatpush1.bf16.msra.mxu0 0
        %1344 = vmatprep.subr.bf16.mxu0 0
        %1345 = vmatpush1.bf16.msra.mxu0 0
        %1346 = vmatprep.subr.bf16.mxu0 0
        %1347 = vmatpush1.bf16.msra.mxu0 0
        %1348 = vmatprep.subr.bf16.mxu0 0
        %1349 = vmatpush1.bf16.msra.mxu0 0
        %1350 = vmatprep.subr.bf16.mxu0 0
        %1351 = vmatpush1.bf16.msra.mxu0 0
        %1352 = vmatprep.subr.bf16.mxu0 0
        %1353 = vmatpush1.bf16.msra.mxu0 0
        %1354 = vmatprep.subr.bf16.mxu0 0
        %1355 = vmatpush1.bf16.msra.mxu0 0
        %1356 = vmatprep.subr.bf16.mxu0 0
        %1357 = vmatpush1.bf16.msra.mxu0 0
        %1358 = vmatprep.subr.bf16.mxu0 0
        %1359 = vmatpush1.bf16.msra.mxu0 0
        %1360 = vmatprep.subr.bf16.mxu0 0
        %1361 = vmatpush1.bf16.msra.mxu0 0
        %1362 = vmatprep.subr.bf16.mxu0 0
        %1363 = vmatpush1.bf16.msra.mxu0 0
        %1364 = vmatprep.mubr.bf16.mxu0 0
        %1365 = vmatmul.mubr.bf16.gmra.mrb[0].mxu0 %v1330
        %v1366 = vpop.f32.mrb[0].mxu0
        %v1367 = vadd.f32 %v1315, %v1366
        %v1368 = vpop.f32.mrb[0].mxu0
        %v1369 = vpop.f32.mrb[0].mxu0
        %v1370 = vpop.f32.mrb[0].mxu0
        %1371 = vdwg.mxu0
        %v1372 = vmax.f32 %v1367, 0.0
        %v1373 = vpack.c.bf16 %v1372, %v1372
        %v1374 = vld [vmem:[%s622] sm:$0xf]
        %v1375 = vld [vmem:[%s622 + $0x4] sm:$0xf]
        %v1376 = vld [vmem:[%s622 + $0x8] sm:$0xf]
        %v1377 = vld [vmem:[%s622 + $0xc] sm:$0xf]
        %v1378 = vld [vmem:[%s622 + $0x10] sm:$0xf]
        %v1379 = vld [vmem:[%s622 + $0x14] sm:$0xf]
        %v1380 = vld [vmem:[%s622 + $0x18] sm:$0xf]
        %v1381 = vld [vmem:[%s622 + $0x1c] sm:$0xf]
        %v1382 = vld [vmem:[%s622 + $0x20] sm:$0xf]
        %v1383 = vld [vmem:[%s622 + $0x24] sm:$0xf]
        %v1384 = vld [vmem:[%s622 + $0x28] sm:$0xf]
        %v1385 = vld [vmem:[%s622 + $0x2c] sm:$0xf]
        %v1386 = vld [vmem:[%s622 + $0x30] sm:$0xf]
        %v1387 = vld [vmem:[%s622 + $0x34] sm:$0xf]
        %v1388 = vld [vmem:[%s622 + $0x38] sm:$0xf]
        %v1389 = vld [vmem:[%s622 + $0x3c] sm:$0xf]
        %v1406 = vunpack.c.l.b16 %v1374
        %v1407 = vunpack.c.l.b16 %v1375
        %v1408 = vunpack.c.l.b16 %v1376
        %v1409 = vunpack.c.l.b16 %v1377
        %v1410 = vunpack.c.l.b16 %v1378
        %v1411 = vunpack.c.l.b16 %v1379
        %v1412 = vunpack.c.l.b16 %v1380
        %v1413 = vunpack.c.l.b16 %v1381
        %v1414 = vunpack.c.l.b16 %v1382
        %v1415 = vunpack.c.l.b16 %v1383
        %v1416 = vunpack.c.l.b16 %v1384
        %v1417 = vunpack.c.l.b16 %v1385
        %v1418 = vunpack.c.l.b16 %v1386
        %v1419 = vunpack.c.l.b16 %v1387
        %v1420 = vunpack.c.l.b16 %v1388
        %v1421 = vunpack.c.l.b16 %v1389
        %v1422 = vpack.c.b16 %v1407, %v1406
        %v1423 = vpack.c.b16 %v1409, %v1408
        %v1424 = vpack.c.b16 %v1411, %v1410
        %v1425 = vpack.c.b16 %v1413, %v1412
        %v1426 = vpack.c.b16 %v1415, %v1414
        %v1427 = vpack.c.b16 %v1417, %v1416
        %v1428 = vpack.c.b16 %v1419, %v1418
        %v1429 = vpack.c.b16 %v1421, %v1420
        %1438 = vmatprep.subr.bf16.mxu0 0
        %1439 = vmatpush1.bf16.msra.mxu0 %v1422
        %1440 = vmatprep.subr.bf16.mxu0 0
        %1441 = vmatpush1.bf16.msra.mxu0 %v1423
        %1442 = vmatprep.subr.bf16.mxu0 0
        %1443 = vmatpush1.bf16.msra.mxu0 %v1424
        %1444 = vmatprep.subr.bf16.mxu0 0
        %1445 = vmatpush1.bf16.msra.mxu0 %v1425
        %1446 = vmatprep.subr.bf16.mxu0 0
        %1447 = vmatpush1.bf16.msra.mxu0 %v1426
        %1448 = vmatprep.subr.bf16.mxu0 0
        %1449 = vmatpush1.bf16.msra.mxu0 %v1427
        %1450 = vmatprep.subr.bf16.mxu0 0
        %1451 = vmatpush1.bf16.msra.mxu0 %v1428
        %1452 = vmatprep.subr.bf16.mxu0 0
        %1453 = vmatpush1.bf16.msra.mxu0 %v1429
        %1454 = vmatprep.subr.bf16.mxu0 0
        %1455 = vmatpush1.bf16.msra.mxu0 0
        %1456 = vmatprep.subr.bf16.mxu0 0
        %1457 = vmatpush1.bf16.msra.mxu0 0
        %1458 = vmatprep.subr.bf16.mxu0 0
        %1459 = vmatpush1.bf16.msra.mxu0 0
        %1460 = vmatprep.subr.bf16.mxu0 0
        %1461 = vmatpush1.bf16.msra.mxu0 0
        %1462 = vmatprep.subr.bf16.mxu0 0
        %1463 = vmatpush1.bf16.msra.mxu0 0
        %1464 = vmatprep.subr.bf16.mxu0 0
        %1465 = vmatpush1.bf16.msra.mxu0 0
        %1466 = vmatprep.subr.bf16.mxu0 0
        %1467 = vmatpush1.bf16.msra.mxu0 0
        %1468 = vmatprep.subr.bf16.mxu0 0
        %1469 = vmatpush1.bf16.msra.mxu0 0
        %1470 = vmatprep.mubr.bf16.mxu0 0
        %1471 = vmatmul.mubr.bf16.gmra.mrb[0].mxu0 %v1373
        %v1472 = vpop.f32.mrb[0].mxu0
        %v1473 = vadd.f32 0.0, %v1472
        %v1474 = vpop.f32.mrb[0].mxu0
        %v1475 = vpop.f32.mrb[0].mxu0
        %v1476 = vpop.f32.mrb[0].mxu0
        %1477 = vdwg.mxu0
        %v1478 = vadd.f32 %v1275, %v1473
        %v1479 = vld [vmem:[%s625] sm:$0x1]
        %v1481 = vlaneseq
        %v1482 = vshrl.u32 %v1481, 7
        %v1483 = vsub.s32 0, %v1482
        %v1484 = vrot.slane %v1479, %v1483
        %v1486 = vadd.f32 %v1478, %v1484
        %1487 = vst.msk [vmem:[#allocation2] sm:$0xff] %vm639, %v1486
        %p1488 = scmp.eq.s32.totalorder %s32, 1
        // Predicated region
        $region77: #{tpu_custom_call.1} parent=71 // pred_check
          %p1489 = pneg %p1488
        $region78: #{tpu_custom_call.1} parent=71 // pred_check_branch
          %1491 = sbr.rel (%p1489) target = $region80
        $region79: #{tpu_custom_call.1} parent=71 // pred_region
          %v1492 = vpack.c.bf16 %v1486, %v1486
          %vm1493 = vcmask 257024
          %1494 = vst.msk [vmem:[%s580] sm:$0xf] %vm1493, %v1492
        $region80: #{tpu_custom_call.1} parent=71 // pred_fallthru
          _
        %s1495 = sand.u32 %s380, 1
        %s1496 = scalar_lea.sflag [#allocation5], %s1495
        %s1497 = sand.u32 %s380, 1
        %s1498 = smul.addr %s1497, 4
        %s1499 = scalar_lea.vmem [#allocation4], %s1498
        // Predicated region
        $region81: #{tpu_custom_call.1} parent=71 // pred_check
          %p1500 = pneg %p390
        $region82: #{tpu_custom_call.1} parent=71 // pred_check_branch
          %1502 = sbr.rel (%p1500) target = $region84
        $region83: #{tpu_custom_call.1} parent=71 // pred_region
          %s1504 = ssub.s32 64, 64
          %1505 = vsyncadd %s1496, %s1504
          %s1506 = smul.addr %s31, 64
          %s1507 = scalar_lea.hbm %s13, %s1506
          %s1509 = sshll.u32 %s1499, 4
          %s1510 = int_to_ptr.vmem [resolvable:$true] %s1509
          %1512 = dma.vmem_to_hbm [thread:$0]  %s1510, 64, %s1507, %s1496
        $region84: #{tpu_custom_call.1} parent=71 // pred_fallthru
          _
      $region72: #{tpu_custom_call.1} parent=5 // pred_fallthru
        _
      %p1513 = scmp.le.s32.totalorder 2, %s22
      // Predicated region
      $region85: #{tpu_custom_call.1} parent=5 // pred_check
        %p1514 = pneg %p1513
      $region86: #{tpu_custom_call.1} parent=5 // pred_check_branch
        %1516 = sbr.rel (%p1514) target = $region88
      $region87: #{tpu_custom_call.1} parent=5 // pred_region
        %s1517 = ssub.s32 %s22, 2
        // Predicated region
        $region89: #{tpu_custom_call.1} parent=87 // pred_check
          %p1518 = pneg %p396
        $region90: #{tpu_custom_call.1} parent=87 // pred_check_branch
          %1520 = sbr.rel (%p1518) target = $region92
        $region91: #{tpu_custom_call.1} parent=87 // pred_region
          %s1521 = sand.u32 %s381, 1
          %s1522 = scalar_lea.sflag [#allocation5], %s1521
          %s1523 = sand.u32 %s381, 1
          %s1524 = smul.addr %s1523, 4
          %s1525 = scalar_lea.vmem [#allocation4], %s1524
          %1526 = dma.done %s1522, 64
        $region92: #{tpu_custom_call.1} parent=87 // pred_fallthru
          _
      $region88: #{tpu_custom_call.1} parent=5 // pred_fallthru
        _
    $region6: #{tpu_custom_call.1} parent=1 // loop_footer
      %s26 = sadd.s32 1, %s22
    $region7: #{tpu_custom_call.1} parent=1 // loop_footer_branch
      %21 = sbr.rel target = $region3
    $region8: #{tpu_custom_call.1} parent=1 // loop_exit
      _
    %1527 = vsyncpa [#allocation5], 1
    %s1528 = scalar_lea.sflag [#allocation5], 1
    %1529 = vsyncpa %s1528, 1

</llo_original>
